<compile_context>
chip_gen: v7x
topology: tpu7x:2x2x1
jax: 0.10.0
libtpu: 0.0.40
codegen_flags: <defaults>
</compile_context>

<pallas_src>
import functools

import jax
import jax.numpy as jnp
from jax import lax
from jax.experimental import pallas as pl
from jax.experimental.pallas import tpu as pltpu

CNN_CRITIC_HIDDEN_1_SIZE = 128
CNN_CRITIC_HIDDEN_2_SIZE = 128

_TM_CAP = 512      # max M-tile for the conv GEMMs (fits comfortably in v7x VMEM)
_TB_CAP = 256      # max batch-tile for the head kernel


def _apply_act(y, act):
    if act == "leaky_relu":          # nn.LeakyReLU default slope 0.01
        return jnp.where(y >= 0.0, y, 0.01 * y)
    if act == "tanh":                # nn.Tanh (continuous=True path)
        return jnp.tanh(y)
    return y


# ----------------------------------------------------------------------------
# Kernel A: M-tiled GEMM + bias + activation (bf16 operands, f32 accumulate).
# Used for conv1 and conv2 (and conv3 in the general-spatial fallback).
# ----------------------------------------------------------------------------
def _gemm_bias_act_kernel(x_ref, w_ref, b_ref, o_ref, *, act):
    y = jnp.dot(x_ref[...], w_ref[...], preferred_element_type=jnp.float32)
    y = _apply_act(y + b_ref[...], act)          # (tm, N) + (1, N), all in f32
    o_ref[...] = y.astype(o_ref.dtype)


def gemm_bias_act(x, w, b, act, out_dtype=jnp.bfloat16):
    """x:(M,K) bf16 @ w:(K,N) bf16 + b:(1,N) f32 -> (M,N) out_dtype, fused activation."""
    M, K = x.shape
    K2, N = w.shape
    assert K == K2, (K, K2)
    tm = M if M <= _TM_CAP else _TM_CAP
    cost = pl.CostEstimate(
        flops=int(2 * M * N * K),
        transcendentals=int(M * N) if act == "tanh" else 0,
        bytes_accessed=int((M * K + K * N + M * N) * 2 + N * 4),
    )
    return pl.pallas_call(
        functools.partial(_gemm_bias_act_kernel, act=act),
        out_shape=jax.ShapeDtypeStruct((M, N), out_dtype),
        grid=(pl.cdiv(M, tm),),
        in_specs=[
            pl.BlockSpec((tm, K), lambda i: (i, 0)),   # patches: tile over M
            pl.BlockSpec((K, N), lambda i: (0, 0)),    # weights: resident
            pl.BlockSpec((1, N), lambda i: (0, 0)),    # bias:    resident
        ],
        out_specs=pl.BlockSpec((tm, N), lambda i: (i, 0)),
        compiler_params=pltpu.CompilerParams(dimension_semantics=("parallel",)),
        cost_estimate=cost,
    )(x, w, b)


# ----------------------------------------------------------------------------
# Kernel B: fused "head" — [conv3 +] l1 (+act) for both trunks, then the critic
# tail (l2 linear, l3 as a VPU row-reduction).  Tiled over the batch.
# ----------------------------------------------------------------------------
def _head_kernel(*refs, act, h1, fuse_conv3):
    if fuse_conv3:
        (x_ref, w3_ref, b3_ref, l1w_ref, l1b_ref, l2w_ref, l2b_ref,
         l3w_ref, l3b_ref, actor_ref, critic_ref) = refs
        # conv3 as an im2col GEMM (spatial 1x1): (tb, K3) @ (K3, 64)
        f = jnp.dot(x_ref[...], w3_ref[...], preferred_element_type=jnp.float32)
        f = _apply_act(f + b3_ref[...], act).astype(jnp.bfloat16)
    else:
        (x_ref, l1w_ref, l1b_ref, l2w_ref, l2b_ref,
         l3w_ref, l3b_ref, actor_ref, critic_ref) = refs
        f = x_ref[...]                                   # already-flattened features (bf16)

    # l1 for both trunks: (tb, F) @ (F, 256); cols [0:128]=actor, [128:256]=critic
    h = jnp.dot(f, l1w_ref[...], preferred_element_type=jnp.float32)
    h = _apply_act(h + l1b_ref[...], act)
    actor_ref[...] = h[:, :h1].astype(actor_ref.dtype)

    # critic tail: l2 (no activation), then l3 (N=1) as a VPU row-reduction
    hc = h[:, h1:].astype(jnp.bfloat16)
    h2 = jnp.dot(hc, l2w_ref[...], preferred_element_type=jnp.float32) + l2b_ref[...]
    v = jnp.sum(h2 * l3w_ref[...], axis=-1, keepdims=True) + l3b_ref[...]
    critic_ref[...] = v.astype(critic_ref.dtype)


def head_call(x, p, act, fuse_conv3, batch, s3):
    h1 = CNN_CRITIC_HIDDEN_1_SIZE
    h2s = CNN_CRITIC_HIDDEN_2_SIZE
    tb = batch if batch <= _TB_CAP else _TB_CAP

    if fuse_conv3:
        assert s3 == 1
        ins = (x, p["w3"], p["b3"], p["l1_w"], p["l1_b"],
               p["l2_w"], p["l2_b"], p["l3_w"], p["l3_b"])
        x_spec = pl.BlockSpec((tb * s3, x.shape[1]), lambda i: (i, 0))
        conv3_flops = 2 * batch * s3 * x.shape[1] * p["w3"].shape[1]
    else:
        ins = (x, p["l1_w"], p["l1_b"],
               p["l2_w"], p["l2_b"], p["l3_w"], p["l3_b"])
        x_spec = pl.BlockSpec((tb, x.shape[1]), lambda i: (i, 0))
        conv3_flops = 0

    in_specs = [x_spec] + [pl.BlockSpec(a.shape, lambda i: (0, 0)) for a in ins[1:]]
    f_dim = p["l1_w"].shape[0]
    cost = pl.CostEstimate(
        flops=int(conv3_flops + 2 * batch * (f_dim * 2 * h1 + h1 * h2s + h2s)),
        transcendentals=int(batch * (s3 * 64 + 2 * h1)) if act == "tanh" else 0,
        bytes_accessed=int(sum(int(a.size) * a.dtype.itemsize for a in ins)
                           + batch * (h1 + 1) * 4),
    )

    actor, critic = pl.pallas_call(
        functools.partial(_head_kernel, act=act, h1=h1, fuse_conv3=fuse_conv3),
        out_shape=(jax.ShapeDtypeStruct((batch, h1), jnp.float32),
                   jax.ShapeDtypeStruct((batch, 1), jnp.float32)),
        grid=(pl.cdiv(batch, tb),),
        in_specs=in_specs,
        out_specs=[pl.BlockSpec((tb, h1), lambda i: (i, 0)),
                   pl.BlockSpec((tb, 1), lambda i: (i, 0))],
        compiler_params=pltpu.CompilerParams(dimension_semantics=("parallel",)),
        cost_estimate=cost,
    )(*ins)
    return actor, critic


# ----------------------------------------------------------------------------
# im2col (XLA layout glue in the wrapper; done ONCE per layer for both trunks).
# ----------------------------------------------------------------------------
def _im2col(x_nhwc, kh, kw, stride):
    B, H, W, C = x_nhwc.shape
    oh = (H - kh) // stride + 1
    ow = (W - kw) // stride + 1
    cols = []
    for i in range(kh):
        for j in range(kw):
            cols.append(x_nhwc[:, i:i + stride * oh:stride, j:j + stride * ow:stride, :])
    patches = jnp.stack(cols, axis=3)            # (B, oh, ow, kh*kw, C)
    return patches.reshape(B * oh * ow, kh * kw * C), oh, ow


# ----------------------------------------------------------------------------
# Parameters: raw per-trunk params (PyTorch-like layout) + a one-time "prepare"
# step that builds the fused/combined bf16 weights consumed by the kernels.
# ----------------------------------------------------------------------------
def _conv_out_hw(h, w):
    h = (h - 8) // 4 + 1; w = (w - 8) // 4 + 1
    h = (h - 4) // 2 + 1; w = (w - 4) // 2 + 1
    h = (h - 3) // 1 + 1; w = (w - 3) // 1 + 1
    return h, w


def _trunk_params(key, in_channels, flat_dim):
    ks = jax.random.split(key, 4)
    s = 0.1
    return {
        "c1_w": s * jax.random.normal(ks[0], (8, 8, in_channels, 32), jnp.float32),
        "c1_b": jnp.zeros((32,), jnp.float32),
        "c2_w": s * jax.random.normal(ks[1], (4, 4, 32, 64), jnp.float32),
        "c2_b": jnp.zeros((64,), jnp.float32),
        "c3_w": s * jax.random.normal(ks[2], (3, 3, 64, 32), jnp.float32),
        "c3_b": jnp.zeros((32,), jnp.float32),
        # l1 rows ordered like PyTorch's NCHW flatten: (c, h, w)
        "l1_w": s * jax.random.normal(ks[3], (flat_dim, CNN_CRITIC_HIDDEN_1_SIZE), jnp.float32),
        "l1_b": jnp.zeros((CNN_CRITIC_HIDDEN_1_SIZE,), jnp.float32),
    }


def init_params(key, in_channels, in_h, in_w):
    h, w = _conv_out_hw(in_h, in_w)
    flat_dim = 32 * h * w
    ka, kc, k2, k3 = jax.random.split(key, 4)
    s = 0.1
    critic = _trunk_params(kc, in_channels, flat_dim)
    critic.update({
        "l2_w": s * jax.random.normal(k2, (CNN_CRITIC_HIDDEN_1_SIZE,
                                           CNN_CRITIC_HIDDEN_2_SIZE), jnp.float32),
        "l2_b": jnp.zeros((CNN_CRITIC_HIDDEN_2_SIZE,), jnp.float32),
        "l3_w": s * jax.random.normal(k3, (CNN_CRITIC_HIDDEN_2_SIZE, 1), jnp.float32),
        "l3_b": jnp.zeros((1,), jnp.float32),
    })
    return {"actor": _trunk_params(ka, in_channels, flat_dim), "critic": critic}


def _combine_conv1(wa, wc):
    # conv1 shares its input between trunks -> plain concat along output channels.
    kh, kw, cin, co = wa.shape
    return jnp.concatenate([wa, wc], axis=3).reshape(kh * kw * cin, 2 * co)


def _combine_conv(wa, wc):
    # Later convs: actor channels feed actor outputs, critic channels feed critic
    # outputs (block structure matching the channel-concatenated activation).
    kh, kw, cin, co = wa.shape
    top = jnp.concatenate([wa, jnp.zeros_like(wa)], axis=3)
    bot = jnp.concatenate([jnp.zeros_like(wc), wc], axis=3)
    return jnp.concatenate([top, bot], axis=2).reshape(kh * kw * 2 * cin, 2 * co)


def _combine_l1(la, lc, c3, oh, ow):
    # Raw rows are in PyTorch NCHW-flatten order (c, h, w); reorder to the kernel's
    # NHWC-combined order (h, w, [actor_c, critic_c]) and block along outputs.
    h1 = la.shape[1]
    a = la.reshape(c3, oh, ow, h1).transpose(1, 2, 0, 3)
    c = lc.reshape(c3, oh, ow, h1).transpose(1, 2, 0, 3)
    top = jnp.concatenate([a, jnp.zeros_like(a)], axis=3)
    bot = jnp.concatenate([jnp.zeros_like(c), c], axis=3)
    return jnp.concatenate([top, bot], axis=2).reshape(oh * ow * 2 * c3, 2 * h1)


def prepare_params(params, in_h, in_w):
    a, c = params["actor"], params["critic"]
    oh3, ow3 = _conv_out_hw(in_h, in_w)
    cat = lambda x, y: jnp.concatenate([x, y]).astype(jnp.float32).reshape(1, -1)
    return {
        # /255 input normalization folded into the conv1 weights
        "w1": (_combine_conv1(a["c1_w"], c["c1_w"]) * (1.0 / 255.0)).astype(jnp.bfloat16),
        "b1": cat(a["c1_b"], c["c1_b"]),
        "w2": _combine_conv(a["c2_w"], c["c2_w"]).astype(jnp.bfloat16),
        "b2": cat(a["c2_b"], c["c2_b"]),
        "w3": _combine_conv(a["c3_w"], c["c3_w"]).astype(jnp.bfloat16),
        "b3": cat(a["c3_b"], c["c3_b"]),
        "l1_w": _combine_l1(a["l1_w"], c["l1_w"], 32, oh3, ow3).astype(jnp.bfloat16),
        "l1_b": cat(a["l1_b"], c["l1_b"]),
        "l2_w": c["l2_w"].astype(jnp.bfloat16),
        "l2_b": c["l2_b"].astype(jnp.float32).reshape(1, -1),
        "l3_w": c["l3_w"].astype(jnp.float32).reshape(1, -1),   # (1, H2): used on the VPU
        "l3_b": c["l3_b"].astype(jnp.float32).reshape(1, 1),
    }


# ----------------------------------------------------------------------------
# CNNBase.forward
# ----------------------------------------------------------------------------
def cnn_base_forward(prepared, inputs, continuous=False):
    x = inputs
    if x.ndim == 3:                       # unsqueeze(0) for CHW input
        x = x[None]
    batch = x.shape[0]
    x = jnp.transpose(x, (0, 2, 3, 1)).astype(jnp.bfloat16)   # NCHW -> NHWC
    act = "tanh" if continuous else "leaky_relu"
    p = prepared

    pat1, oh1, ow1 = _im2col(x, 8, 8, 4)
    a1 = gemm_bias_act(pat1, p["w1"], p["b1"], act).reshape(batch, oh1, ow1, 64)

    pat2, oh2, ow2 = _im2col(a1, 4, 4, 2)
    a2 = gemm_bias_act(pat2, p["w2"], p["b2"], act).reshape(batch, oh2, ow2, 128)

    pat3, oh3, ow3 = _im2col(a2, 3, 3, 1)
    s3 = oh3 * ow3
    if s3 == 1:
        # conv3 + l1 + critic l2/l3 fused into a single kernel (3 launches total)
        hidden_actor, hidden_critic = head_call(pat3, p, act, fuse_conv3=True,
                                                batch=batch, s3=1)
    else:
        # general spatial size: conv3 GEMM, flatten in wrapper, then the head kernel
        a3 = gemm_bias_act(pat3, p["w3"], p["b3"], act)            # (B*s3, 64)
        flat = a3.reshape(batch, s3 * 64)                          # (h, w, [a, c]) order
        hidden_actor, hidden_critic = head_call(flat, p, act, fuse_conv3=False,
                                                batch=batch, s3=s3)
    return hidden_critic, hidden_actor


# ----------------------------------------------------------------------------
# Pure-JAX f32 reference (for correctness cross-check).
# ----------------------------------------------------------------------------
def _reference_forward(params, inputs, continuous=False):
    x = inputs.astype(jnp.float32) / 255.0
    if x.ndim == 3:
        x = x[None]
    x = jnp.transpose(x, (0, 2, 3, 1))
    act = jnp.tanh if continuous else (lambda v: jnp.where(v >= 0.0, v, 0.01 * v))

    def trunk(p):
        h = x
        for wk, bk, s in (("c1_w", "c1_b", 4), ("c2_w", "c2_b", 2), ("c3_w", "c3_b", 1)):
            h = lax.conv_general_dilated(h, p[wk], (s, s), "VALID",
                                         dimension_numbers=("NHWC", "HWIO", "NHWC"))
            h = act(h + p[bk])
        b = h.shape[0]
        flat = jnp.transpose(h, (0, 3, 1, 2)).reshape(b, -1)    # NCHW flatten order
        return act(flat @ p["l1_w"] + p["l1_b"])

    ha = trunk(params["actor"])
    hc = trunk(params["critic"])
    hc = hc @ params["critic"]["l2_w"] + params["critic"]["l2_b"]
    hc = hc @ params["critic"]["l3_w"] + params["critic"]["l3_b"]
    return hc, ha


if __name__ == "__main__":
    B, C, H, W = 2, 4, 36, 36            # spatial: 36 -> 8 -> 3 -> 1
    inputs = jax.random.uniform(jax.random.PRNGKey(0), (B, C, H, W),
                                jnp.float32, 0.0, 255.0)
    params = init_params(jax.random.PRNGKey(1), C, H, W)
    prepared = prepare_params(params, H, W)

    fwd = jax.jit(functools.partial(cnn_base_forward, continuous=False))
    hidden_critic, hidden_actor = fwd(prepared, inputs)
    jax.block_until_ready((hidden_critic, hidden_actor))

    assert hidden_critic.shape == (B, 1), hidden_critic.shape
    assert hidden_actor.shape == (B, CNN_CRITIC_HIDDEN_1_SIZE), hidden_actor.shape
    assert bool(jnp.all(jnp.isfinite(hidden_critic)))
    assert bool(jnp.all(jnp.isfinite(hidden_actor)))

    # Cross-check against the pure-JAX f32 reference (bf16 kernels -> loose tolerance).
    ref_critic, ref_actor = _reference_forward(params, inputs, continuous=False)
    err = max(float(jnp.max(jnp.abs(hidden_actor - ref_actor))),
              float(jnp.max(jnp.abs(hidden_critic - ref_critic))))
    assert err < 0.5, f"mismatch vs reference: max abs err {err}"

    print("KERNEL_OK")
</pallas_src>

<mosaic_0001>
module attributes {stable_mosaic.version = 11 : i64} {
  func.func @_gemm_bias_act_kernel(%arg0: i32, %arg1: memref<128x256xbf16, #tpu.memory_space<vmem>>, %arg2: memref<256x64xbf16, #tpu.memory_space<vmem>>, %arg3: memref<1x64xf32, #tpu.memory_space<vmem>>, %arg4: memref<128x64xbf16, #tpu.memory_space<vmem>>) attributes {dimension_semantics = [#tpu.dimension_semantics<parallel>], iteration_bounds = array<i64: 1>, scalar_prefetch = 0 : i64, scratch_operands = 0 : i64, tpu.core_type = #tpu.core_type<tc>, window_params = [{transform_indices = @transform_0, window_bounds = array<i64: 128, 256>}, {pipeline_mode = #tpu.pipeline_mode<synchronous>, transform_indices = @transform_1, window_bounds = array<i64: 256, 64>}, {pipeline_mode = #tpu.pipeline_mode<synchronous>, transform_indices = @transform_2, window_bounds = array<i64: 1, 64>}, {transform_indices = @transform_3, window_bounds = array<i64: 128, 64>}]} {
    %c0 = arith.constant 0 : index
    %c0_0 = arith.constant 0 : index
    %0 = vector.load %arg1[%c0, %c0_0] : memref<128x256xbf16, #tpu.memory_space<vmem>>, vector<128x256xbf16>
    %c0_1 = arith.constant 0 : index
    %c0_2 = arith.constant 0 : index
    %1 = vector.load %arg2[%c0_1, %c0_2] : memref<256x64xbf16, #tpu.memory_space<vmem>>, vector<256x64xbf16>
    %cst = arith.constant dense<0.000000e+00> : vector<128x64xf32>
    %2 = tpu.matmul %0, %1, %cst {dimension_numbers = #tpu.dot_dimension_numbers<[1], [0], [0], [1], [0, 0, 1, 1], [], []>} : vector<128x256xbf16>, vector<256x64xbf16>, vector<128x64xf32> -> vector<128x64xf32>
    %c0_3 = arith.constant 0 : index
    %c0_4 = arith.constant 0 : index
    %3 = vector.load %arg3[%c0_3, %c0_4] : memref<1x64xf32, #tpu.memory_space<vmem>>, vector<1x64xf32>
    %4 = vector.broadcast %3 : vector<1x64xf32> to vector<128x64xf32>
    %5 = arith.addf %2, %4 : vector<128x64xf32>
    %cst_5 = arith.constant 0.000000e+00 : f32
    %6 = vector.broadcast %cst_5 : f32 to vector<128x64xf32>
    %7 = arith.cmpf oge, %5, %6 : vector<128x64xf32>
    %cst_6 = arith.constant 0.00999999977 : f32
    %8 = vector.broadcast %cst_6 : f32 to vector<128x64xf32>
    %9 = arith.mulf %8, %5 : vector<128x64xf32>
    %10 = arith.select %7, %5, %9 : vector<128x64xi1>, vector<128x64xf32>
    %11 = arith.truncf %10 : vector<128x64xf32> to vector<128x64xbf16>
    %c0_7 = arith.constant 0 : index
    %c0_8 = arith.constant 0 : index
    %12 = vector.load %arg4[%c0_7, %c0_8] : memref<128x64xbf16, #tpu.memory_space<vmem>>, vector<128x64xbf16>
    tpu.vector_store %arg4[%c0_7, %c0_8], %11 {strides = array<i32>} : memref<128x64xbf16, #tpu.memory_space<vmem>>, vector<128x64xbf16>,
    return
  }
  func.func @transform_0(%arg0: i32) -> (i32, i32) {
    %c0_i32 = arith.constant 0 : i32
    %c0_i32_0 = arith.constant 0 : i32
    return %arg0, %c0_i32 : i32, i32
  }
  func.func @transform_1(%arg0: i32) -> (i32, i32) {
    %c0_i32 = arith.constant 0 : i32
    %c0_i32_0 = arith.constant 0 : i32
    %c0_i32_1 = arith.constant 0 : i32
    return %c0_i32, %c0_i32_0 : i32, i32
  }
  func.func @transform_2(%arg0: i32) -> (i32, i32) {
    %c0_i32 = arith.constant 0 : i32
    %c0_i32_0 = arith.constant 0 : i32
    %c0_i32_1 = arith.constant 0 : i32
    return %c0_i32, %c0_i32_0 : i32, i32
  }
  func.func @transform_3(%arg0: i32) -> (i32, i32) {
    %c0_i32 = arith.constant 0 : i32
    %c0_i32_0 = arith.constant 0 : i32
    return %arg0, %c0_i32 : i32, i32
  }
}

module attributes {stable_mosaic.version = 11 : i64} {
  func.func @_gemm_bias_act_kernel(%arg0: i32, %arg1: memref<18x1024xbf16, #tpu.memory_space<vmem>>, %arg2: memref<1024x128xbf16, #tpu.memory_space<vmem>>, %arg3: memref<1x128xf32, #tpu.memory_space<vmem>>, %arg4: memref<18x128xbf16, #tpu.memory_space<vmem>>) attributes {dimension_semantics = [#tpu.dimension_semantics<parallel>], iteration_bounds = array<i64: 1>, scalar_prefetch = 0 : i64, scratch_operands = 0 : i64, tpu.core_type = #tpu.core_type<tc>, window_params = [{transform_indices = @transform_0, window_bounds = array<i64: 18, 1024>}, {pipeline_mode = #tpu.pipeline_mode<synchronous>, transform_indices = @transform_1, window_bounds = array<i64: 1024, 128>}, {pipeline_mode = #tpu.pipeline_mode<synchronous>, transform_indices = @transform_2, window_bounds = array<i64: 1, 128>}, {transform_indices = @transform_3, window_bounds = array<i64: 18, 128>}]} {
    %c0 = arith.constant 0 : index
    %c0_0 = arith.constant 0 : index
    %0 = vector.load %arg1[%c0, %c0_0] : memref<18x1024xbf16, #tpu.memory_space<vmem>>, vector<18x1024xbf16>
    %c0_1 = arith.constant 0 : index
    %c0_2 = arith.constant 0 : index
    %1 = vector.load %arg2[%c0_1, %c0_2] : memref<1024x128xbf16, #tpu.memory_space<vmem>>, vector<1024x128xbf16>
    %cst = arith.constant dense<0.000000e+00> : vector<18x128xf32>
    %2 = tpu.matmul %0, %1, %cst {dimension_numbers = #tpu.dot_dimension_numbers<[1], [0], [0], [1], [0, 0, 1, 1], [], []>} : vector<18x1024xbf16>, vector<1024x128xbf16>, vector<18x128xf32> -> vector<18x128xf32>
    %c0_3 = arith.constant 0 : index
    %c0_4 = arith.constant 0 : index
    %3 = vector.load %arg3[%c0_3, %c0_4] : memref<1x128xf32, #tpu.memory_space<vmem>>, vector<1x128xf32>
    %4 = vector.broadcast %3 : vector<1x128xf32> to vector<18x128xf32>
    %5 = arith.addf %2, %4 : vector<18x128xf32>
    %cst_5 = arith.constant 0.000000e+00 : f32
    %6 = vector.broadcast %cst_5 : f32 to vector<18x128xf32>
    %7 = arith.cmpf oge, %5, %6 : vector<18x128xf32>
    %cst_6 = arith.constant 0.00999999977 : f32
    %8 = vector.broadcast %cst_6 : f32 to vector<18x128xf32>
    %9 = arith.mulf %8, %5 : vector<18x128xf32>
    %10 = arith.select %7, %5, %9 : vector<18x128xi1>, vector<18x128xf32>
    %11 = arith.truncf %10 : vector<18x128xf32> to vector<18x128xbf16>
    %c0_7 = arith.constant 0 : index
    %c0_8 = arith.constant 0 : index
    %12 = vector.load %arg4[%c0_7, %c0_8] : memref<18x128xbf16, #tpu.memory_space<vmem>>, vector<18x128xbf16>
    tpu.vector_store %arg4[%c0_7, %c0_8], %11 {strides = array<i32>} : memref<18x128xbf16, #tpu.memory_space<vmem>>, vector<18x128xbf16>,
    return
  }
  func.func @transform_0(%arg0: i32) -> (i32, i32) {
    %c0_i32 = arith.constant 0 : i32
    %c0_i32_0 = arith.constant 0 : i32
    return %arg0, %c0_i32 : i32, i32
  }
  func.func @transform_1(%arg0: i32) -> (i32, i32) {
    %c0_i32 = arith.constant 0 : i32
    %c0_i32_0 = arith.constant 0 : i32
    %c0_i32_1 = arith.constant 0 : i32
    return %c0_i32, %c0_i32_0 : i32, i32
  }
  func.func @transform_2(%arg0: i32) -> (i32, i32) {
    %c0_i32 = arith.constant 0 : i32
    %c0_i32_0 = arith.constant 0 : i32
    %c0_i32_1 = arith.constant 0 : i32
    return %c0_i32, %c0_i32_0 : i32, i32
  }
  func.func @transform_3(%arg0: i32) -> (i32, i32) {
    %c0_i32 = arith.constant 0 : i32
    %c0_i32_0 = arith.constant 0 : i32
    return %arg0, %c0_i32 : i32, i32
  }
}

module attributes {stable_mosaic.version = 11 : i64} {
  func.func @_head_kernel(%arg0: i32, %arg1: memref<2x1152xbf16, #tpu.memory_space<vmem>>, %arg2: memref<1152x64xbf16, #tpu.memory_space<vmem>>, %arg3: memref<1x64xf32, #tpu.memory_space<vmem>>, %arg4: memref<64x256xbf16, #tpu.memory_space<vmem>>, %arg5: memref<1x256xf32, #tpu.memory_space<vmem>>, %arg6: memref<128x128xbf16, #tpu.memory_space<vmem>>, %arg7: memref<1x128xf32, #tpu.memory_space<vmem>>, %arg8: memref<1x128xf32, #tpu.memory_space<vmem>>, %arg9: memref<1x1xf32, #tpu.memory_space<vmem>>, %arg10: memref<2x128xf32, #tpu.memory_space<vmem>>, %arg11: memref<2x1xf32, #tpu.memory_space<vmem>>) attributes {dimension_semantics = [#tpu.dimension_semantics<parallel>], iteration_bounds = array<i64: 1>, scalar_prefetch = 0 : i64, scratch_operands = 0 : i64, tpu.core_type = #tpu.core_type<tc>, window_params = [{transform_indices = @transform_0, window_bounds = array<i64: 2, 1152>}, {pipeline_mode = #tpu.pipeline_mode<synchronous>, transform_indices = @transform_1, window_bounds = array<i64: 1152, 64>}, {pipeline_mode = #tpu.pipeline_mode<synchronous>, transform_indices = @transform_2, window_bounds = array<i64: 1, 64>}, {pipeline_mode = #tpu.pipeline_mode<synchronous>, transform_indices = @transform_3, window_bounds = array<i64: 64, 256>}, {pipeline_mode = #tpu.pipeline_mode<synchronous>, transform_indices = @transform_4, window_bounds = array<i64: 1, 256>}, {pipeline_mode = #tpu.pipeline_mode<synchronous>, transform_indices = @transform_5, window_bounds = array<i64: 128, 128>}, {pipeline_mode = #tpu.pipeline_mode<synchronous>, transform_indices = @transform_6, window_bounds = array<i64: 1, 128>}, {pipeline_mode = #tpu.pipeline_mode<synchronous>, transform_indices = @transform_7, window_bounds = array<i64: 1, 128>}, {pipeline_mode = #tpu.pipeline_mode<synchronous>, transform_indices = @transform_8, window_bounds = array<i64: 1, 1>}, {transform_indices = @transform_9, window_bounds = array<i64: 2, 128>}, {transform_indices = @transform_10, window_bounds = array<i64: 2, 1>}]} {
    %c0 = arith.constant 0 : index
    %c0_0 = arith.constant 0 : index
    %0 = vector.load %arg1[%c0, %c0_0] : memref<2x1152xbf16, #tpu.memory_space<vmem>>, vector<2x1152xbf16>
    %c0_1 = arith.constant 0 : index
    %c0_2 = arith.constant 0 : index
    %1 = vector.load %arg2[%c0_1, %c0_2] : memref<1152x64xbf16, #tpu.memory_space<vmem>>, vector<1152x64xbf16>
    %cst = arith.constant dense<0.000000e+00> : vector<2x64xf32>
    %2 = tpu.matmul %0, %1, %cst {dimension_numbers = #tpu.dot_dimension_numbers<[1], [0], [0], [1], [0, 0, 1, 1], [], []>} : vector<2x1152xbf16>, vector<1152x64xbf16>, vector<2x64xf32> -> vector<2x64xf32>
    %c0_3 = arith.constant 0 : index
    %c0_4 = arith.constant 0 : index
    %3 = vector.load %arg3[%c0_3, %c0_4] : memref<1x64xf32, #tpu.memory_space<vmem>>, vector<1x64xf32>
    %4 = vector.broadcast %3 : vector<1x64xf32> to vector<2x64xf32>
    %5 = arith.addf %2, %4 : vector<2x64xf32>
    %cst_5 = arith.constant 0.000000e+00 : f32
    %6 = vector.broadcast %cst_5 : f32 to vector<2x64xf32>
    %7 = arith.cmpf oge, %5, %6 : vector<2x64xf32>
    %cst_6 = arith.constant 0.00999999977 : f32
    %8 = vector.broadcast %cst_6 : f32 to vector<2x64xf32>
    %9 = arith.mulf %8, %5 : vector<2x64xf32>
    %10 = arith.select %7, %5, %9 : vector<2x64xi1>, vector<2x64xf32>
    %11 = arith.truncf %10 : vector<2x64xf32> to vector<2x64xbf16>
    %c0_7 = arith.constant 0 : index
    %c0_8 = arith.constant 0 : index
    %12 = vector.load %arg4[%c0_7, %c0_8] : memref<64x256xbf16, #tpu.memory_space<vmem>>, vector<64x256xbf16>
    %cst_9 = arith.constant dense<0.000000e+00> : vector<2x256xf32>
    %13 = tpu.matmul %11, %12, %cst_9 {dimension_numbers = #tpu.dot_dimension_numbers<[1], [0], [0], [1], [0, 0, 1, 1], [], []>} : vector<2x64xbf16>, vector<64x256xbf16>, vector<2x256xf32> -> vector<2x256xf32>
    %c0_10 = arith.constant 0 : index
    %c0_11 = arith.constant 0 : index
    %14 = vector.load %arg5[%c0_10, %c0_11] : memref<1x256xf32, #tpu.memory_space<vmem>>, vector<1x256xf32>
    %15 = vector.broadcast %14 : vector<1x256xf32> to vector<2x256xf32>
    %16 = arith.addf %13, %15 : vector<2x256xf32>
    %cst_12 = arith.constant 0.000000e+00 : f32
    %17 = vector.broadcast %cst_12 : f32 to vector<2x256xf32>
    %18 = arith.cmpf oge, %16, %17 : vector<2x256xf32>
    %cst_13 = arith.constant 0.00999999977 : f32
    %19 = vector.broadcast %cst_13 : f32 to vector<2x256xf32>
    %20 = arith.mulf %19, %16 : vector<2x256xf32>
    %21 = arith.select %18, %16, %20 : vector<2x256xi1>, vector<2x256xf32>
    %22 = vector.extract_strided_slice %21 {offsets = [0, 0], sizes = [2, 128], strides = [1, 1]} : vector<2x256xf32> to vector<2x128xf32>
    %c0_14 = arith.constant 0 : index
    %c0_15 = arith.constant 0 : index
    %23 = vector.load %arg10[%c0_14, %c0_15] : memref<2x128xf32, #tpu.memory_space<vmem>>, vector<2x128xf32>
    tpu.vector_store %arg10[%c0_14, %c0_15], %22 {strides = array<i32>} : memref<2x128xf32, #tpu.memory_space<vmem>>, vector<2x128xf32>,
    %24 = vector.extract_strided_slice %21 {offsets = [0, 128], sizes = [2, 128], strides = [1, 1]} : vector<2x256xf32> to vector<2x128xf32>
    %25 = arith.truncf %24 : vector<2x128xf32> to vector<2x128xbf16>
    %c0_16 = arith.constant 0 : index
    %c0_17 = arith.constant 0 : index
    %26 = vector.load %arg6[%c0_16, %c0_17] : memref<128x128xbf16, #tpu.memory_space<vmem>>, vector<128x128xbf16>
    %cst_18 = arith.constant dense<0.000000e+00> : vector<2x128xf32>
    %27 = tpu.matmul %25, %26, %cst_18 {dimension_numbers = #tpu.dot_dimension_numbers<[1], [0], [0], [1], [0, 0, 1, 1], [], []>} : vector<2x128xbf16>, vector<128x128xbf16>, vector<2x128xf32> -> vector<2x128xf32>
    %c0_19 = arith.constant 0 : index
    %c0_20 = arith.constant 0 : index
    %28 = vector.load %arg7[%c0_19, %c0_20] : memref<1x128xf32, #tpu.memory_space<vmem>>, vector<1x128xf32>
    %29 = vector.broadcast %28 : vector<1x128xf32> to vector<2x128xf32>
    %30 = arith.addf %27, %29 : vector<2x128xf32>
    %c0_21 = arith.constant 0 : index
    %c0_22 = arith.constant 0 : index
    %31 = vector.load %arg8[%c0_21, %c0_22] : memref<1x128xf32, #tpu.memory_space<vmem>>, vector<1x128xf32>
    %32 = vector.broadcast %31 : vector<1x128xf32> to vector<2x128xf32>
    %33 = arith.mulf %30, %32 : vector<2x128xf32>
    %cst_23 = arith.constant dense<0.000000e+00> : vector<2xf32>
    %34 = vector.multi_reduction <add>, %33, %cst_23 [1] : vector<2x128xf32> to vector<2xf32>
    %35 = vector.shape_cast %34 : vector<2xf32> to vector<2x1xf32>
    %c0_24 = arith.constant 0 : index
    %c0_25 = arith.constant 0 : index
    %36 = vector.load %arg9[%c0_24, %c0_25] : memref<1x1xf32, #tpu.memory_space<vmem>>, vector<1x1xf32>
    %37 = vector.broadcast %36 : vector<1x1xf32> to vector<2x1xf32>
    %38 = arith.addf %35, %37 : vector<2x1xf32>
    %c0_26 = arith.constant 0 : index
    %c0_27 = arith.constant 0 : index
    %39 = vector.load %arg11[%c0_26, %c0_27] : memref<2x1xf32, #tpu.memory_space<vmem>>, vector<2x1xf32>
    tpu.vector_store %arg11[%c0_26, %c0_27], %38 {strides = array<i32>} : memref<2x1xf32, #tpu.memory_space<vmem>>, vector<2x1xf32>,
    return
  }
  func.func @transform_0(%arg0: i32) -> (i32, i32) {
    %c0_i32 = arith.constant 0 : i32
    %c0_i32_0 = arith.constant 0 : i32
    return %arg0, %c0_i32 : i32, i32
  }
  func.func @transform_1(%arg0: i32) -> (i32, i32) {
    %c0_i32 = arith.constant 0 : i32
    %c0_i32_0 = arith.constant 0 : i32
    %c0_i32_1 = arith.constant 0 : i32
    return %c0_i32, %c0_i32_0 : i32, i32
  }
  func.func @transform_2(%arg0: i32) -> (i32, i32) {
    %c0_i32 = arith.constant 0 : i32
    %c0_i32_0 = arith.constant 0 : i32
    %c0_i32_1 = arith.constant 0 : i32
    return %c0_i32, %c0_i32_0 : i32, i32
  }
  func.func @transform_3(%arg0: i32) -> (i32, i32) {
    %c0_i32 = arith.constant 0 : i32
    %c0_i32_0 = arith.constant 0 : i32
    %c0_i32_1 = arith.constant 0 : i32
    return %c0_i32, %c0_i32_0 : i32, i32
  }
  func.func @transform_4(%arg0: i32) -> (i32, i32) {
    %c0_i32 = arith.constant 0 : i32
    %c0_i32_0 = arith.constant 0 : i32
    %c0_i32_1 = arith.constant 0 : i32
    return %c0_i32, %c0_i32_0 : i32, i32
  }
  func.func @transform_5(%arg0: i32) -> (i32, i32) {
    %c0_i32 = arith.constant 0 : i32
    %c0_i32_0 = arith.constant 0 : i32
    %c0_i32_1 = arith.constant 0 : i32
    return %c0_i32, %c0_i32_0 : i32, i32
  }
  func.func @transform_6(%arg0: i32) -> (i32, i32) {
    %c0_i32 = arith.constant 0 : i32
    %c0_i32_0 = arith.constant 0 : i32
    %c0_i32_1 = arith.constant 0 : i32
    return %c0_i32, %c0_i32_0 : i32, i32
  }
  func.func @transform_7(%arg0: i32) -> (i32, i32) {
    %c0_i32 = arith.constant 0 : i32
    %c0_i32_0 = arith.constant 0 : i32
    %c0_i32_1 = arith.constant 0 : i32
    return %c0_i32, %c0_i32_0 : i32, i32
  }
  func.func @transform_8(%arg0: i32) -> (i32, i32) {
    %c0_i32 = arith.constant 0 : i32
    %c0_i32_0 = arith.constant 0 : i32
    %c0_i32_1 = arith.constant 0 : i32
    return %c0_i32, %c0_i32_0 : i32, i32
  }
  func.func @transform_9(%arg0: i32) -> (i32, i32) {
    %c0_i32 = arith.constant 0 : i32
    %c0_i32_0 = arith.constant 0 : i32
    return %arg0, %c0_i32 : i32, i32
  }
  func.func @transform_10(%arg0: i32) -> (i32, i32) {
    %c0_i32 = arith.constant 0 : i32
    %c0_i32_0 = arith.constant 0 : i32
    return %arg0, %c0_i32 : i32, i32
  }
}

</mosaic_0001>

<llo_original>
// kernel: cnn_base_forward.3
$region0: #{cnn_base_forward.3}
  #allocation0 [shape = 'u32[]', space=smem, size = 0x4, offset = 0x4, fixed_abs, tag = 'smem constant byte address 0x4 - core index']
  #allocation1 [shape = 'u32[144,128]{1,0:T(1,128)}', space=vmem, size = 0x12000, scoped, tag = 'internal scratch']
  %s0 = inlined_call_operand.vmem [shape: bf16[128,256], index: 0, kind: input, shape index: {}]
  %s1 = inlined_call_operand.vmem [shape: bf16[256,64], index: 1, kind: input, shape index: {}]
  %s2 = inlined_call_operand.vmem [shape: f32[1,64], index: 2, kind: input, shape index: {}]
  %s3 = inlined_call_operand.vmem [shape: bf16[128,64], index: 3, kind: output, shape index: {}]
  %s4 = sld [smem:[#allocation0]]
  $region22: #{cnn_base_forward.3} parent=0
    _
  %s6 = ssub.s32 1, %s4
  %s7 = scalar_select 0, %s6, %s4
  // Predicated region
  $region2: #{cnn_base_forward.3} parent=0 // pred_check
    _
  $region3: #{cnn_base_forward.3} parent=0 // pred_check_branch
    %9 = sbr.rel (0) target = $region5
  $region4: #{cnn_base_forward.3} parent=0 // pred_region
    _
  $region5: #{cnn_base_forward.3} parent=0 // pred_fallthru
    _
  // Predicated region
  $region6: #{cnn_base_forward.3} parent=0 // pred_check
    _
  $region7: #{cnn_base_forward.3} parent=0 // pred_check_branch
    %11 = sbr.rel (0) target = $region9
  $region8: #{cnn_base_forward.3} parent=0 // pred_region
    _
  $region9: #{cnn_base_forward.3} parent=0 // pred_fallthru
    _
  // Predicated region
  $region10: #{cnn_base_forward.3} parent=0 // pred_check
    _
  $region11: #{cnn_base_forward.3} parent=0 // pred_check_branch
    %13 = sbr.rel (0) target = $region13
  $region12: #{cnn_base_forward.3} parent=0 // pred_region
    _
  $region13: #{cnn_base_forward.3} parent=0 // pred_fallthru
    _
  %v15 = vld [vmem:[%s0] sm:$0xff]
  %v16 = vld [vmem:[%s0 + $0x8] sm:$0xff]
  %v17 = vld [vmem:[%s0 + $0x10] sm:$0xff]
  %v18 = vld [vmem:[%s0 + $0x18] sm:$0xff]
  %v19 = vld [vmem:[%s0 + $0x20] sm:$0xff]
  %v20 = vld [vmem:[%s0 + $0x28] sm:$0xff]
  %v21 = vld [vmem:[%s0 + $0x30] sm:$0xff]
  %v22 = vld [vmem:[%s0 + $0x38] sm:$0xff]
  %v23 = vld [vmem:[%s0 + $0x40] sm:$0xff]
  %v24 = vld [vmem:[%s0 + $0x48] sm:$0xff]
  %v25 = vld [vmem:[%s0 + $0x50] sm:$0xff]
  %v26 = vld [vmem:[%s0 + $0x58] sm:$0xff]
  %v27 = vld [vmem:[%s0 + $0x60] sm:$0xff]
  %v28 = vld [vmem:[%s0 + $0x68] sm:$0xff]
  %v29 = vld [vmem:[%s0 + $0x70] sm:$0xff]
  %v30 = vld [vmem:[%s0 + $0x78] sm:$0xff]
  %v31 = vld [vmem:[%s1] sm:$0xf]
  %v32 = vld [vmem:[%s1 + $0x4] sm:$0xf]
  %v33 = vld [vmem:[%s1 + $0x8] sm:$0xf]
  %v34 = vld [vmem:[%s1 + $0xc] sm:$0xf]
  %v35 = vld [vmem:[%s1 + $0x10] sm:$0xf]
  %v36 = vld [vmem:[%s1 + $0x14] sm:$0xf]
  %v37 = vld [vmem:[%s1 + $0x18] sm:$0xf]
  %v38 = vld [vmem:[%s1 + $0x1c] sm:$0xf]
  %v39 = vld [vmem:[%s1 + $0x20] sm:$0xf]
  %v40 = vld [vmem:[%s1 + $0x24] sm:$0xf]
  %v41 = vld [vmem:[%s1 + $0x28] sm:$0xf]
  %v42 = vld [vmem:[%s1 + $0x2c] sm:$0xf]
  %v43 = vld [vmem:[%s1 + $0x30] sm:$0xf]
  %v44 = vld [vmem:[%s1 + $0x34] sm:$0xf]
  %v45 = vld [vmem:[%s1 + $0x38] sm:$0xf]
  %v46 = vld [vmem:[%s1 + $0x3c] sm:$0xf]
  %v47 = vld [vmem:[%s1 + $0x40] sm:$0xf]
  %v48 = vld [vmem:[%s1 + $0x44] sm:$0xf]
  %v49 = vld [vmem:[%s1 + $0x48] sm:$0xf]
  %v50 = vld [vmem:[%s1 + $0x4c] sm:$0xf]
  %v51 = vld [vmem:[%s1 + $0x50] sm:$0xf]
  %v52 = vld [vmem:[%s1 + $0x54] sm:$0xf]
  %v53 = vld [vmem:[%s1 + $0x58] sm:$0xf]
  %v54 = vld [vmem:[%s1 + $0x5c] sm:$0xf]
  %v55 = vld [vmem:[%s1 + $0x60] sm:$0xf]
  %v56 = vld [vmem:[%s1 + $0x64] sm:$0xf]
  %v57 = vld [vmem:[%s1 + $0x68] sm:$0xf]
  %v58 = vld [vmem:[%s1 + $0x6c] sm:$0xf]
  %v59 = vld [vmem:[%s1 + $0x70] sm:$0xf]
  %v60 = vld [vmem:[%s1 + $0x74] sm:$0xf]
  %v61 = vld [vmem:[%s1 + $0x78] sm:$0xf]
  %v62 = vld [vmem:[%s1 + $0x7c] sm:$0xf]
  %v63 = vld [vmem:[%s2] sm:$0x1]
  %v65 = vlaneseq
  %v66 = vshrl.u32 %v65, 7
  %v67 = vsub.s32 0, %v66
  %v68 = vrot.slane %v63, %v67
  %v86 = vunpack.c.l.b16 %v15
  %v87 = vunpack.c.h.b16 %v15
  %v88 = vunpack.c.l.b16 %v16
  %v89 = vunpack.c.h.b16 %v16
  %v90 = vunpack.c.l.b16 %v17
  %v91 = vunpack.c.h.b16 %v17
  %v92 = vunpack.c.l.b16 %v18
  %v93 = vunpack.c.h.b16 %v18
  %v94 = vunpack.c.l.b16 %v19
  %v95 = vunpack.c.h.b16 %v19
  %v96 = vunpack.c.l.b16 %v20
  %v97 = vunpack.c.h.b16 %v20
  %v98 = vunpack.c.l.b16 %v21
  %v99 = vunpack.c.h.b16 %v21
  %v100 = vunpack.c.l.b16 %v22
  %v101 = vunpack.c.h.b16 %v22
  %v102 = vunpack.c.l.b16 %v23
  %v103 = vunpack.c.h.b16 %v23
  %v104 = vunpack.c.l.b16 %v24
  %v105 = vunpack.c.h.b16 %v24
  %v106 = vunpack.c.l.b16 %v25
  %v107 = vunpack.c.h.b16 %v25
  %v108 = vunpack.c.l.b16 %v26
  %v109 = vunpack.c.h.b16 %v26
  %v110 = vunpack.c.l.b16 %v27
  %v111 = vunpack.c.h.b16 %v27
  %v112 = vunpack.c.l.b16 %v28
  %v113 = vunpack.c.h.b16 %v28
  %v114 = vunpack.c.l.b16 %v29
  %v115 = vunpack.c.h.b16 %v29
  %v116 = vunpack.c.l.b16 %v30
  %v117 = vunpack.c.h.b16 %v30
  %v118 = vpack.c.b16 %v88, %v86
  %v119 = vpack.c.b16 %v89, %v87
  %v120 = vpack.c.b16 %v92, %v90
  %v121 = vpack.c.b16 %v93, %v91
  %v122 = vpack.c.b16 %v96, %v94
  %v123 = vpack.c.b16 %v97, %v95
  %v124 = vpack.c.b16 %v100, %v98
  %v125 = vpack.c.b16 %v101, %v99
  %v126 = vpack.c.b16 %v104, %v102
  %v127 = vpack.c.b16 %v105, %v103
  %v128 = vpack.c.b16 %v108, %v106
  %v129 = vpack.c.b16 %v109, %v107
  %v130 = vpack.c.b16 %v112, %v110
  %v131 = vpack.c.b16 %v113, %v111
  %v132 = vpack.c.b16 %v116, %v114
  %v133 = vpack.c.b16 %v117, %v115
  %v182 = vunpack.c.l.b16 %v31
  %v183 = vunpack.c.l.b16 %v32
  %v184 = vunpack.c.l.b16 %v33
  %v185 = vunpack.c.l.b16 %v34
  %v186 = vunpack.c.l.b16 %v35
  %v187 = vunpack.c.l.b16 %v36
  %v188 = vunpack.c.l.b16 %v37
  %v189 = vunpack.c.l.b16 %v38
  %v190 = vunpack.c.l.b16 %v39
  %v191 = vunpack.c.l.b16 %v40
  %v192 = vunpack.c.l.b16 %v41
  %v193 = vunpack.c.l.b16 %v42
  %v194 = vunpack.c.l.b16 %v43
  %v195 = vunpack.c.l.b16 %v44
  %v196 = vunpack.c.l.b16 %v45
  %v197 = vunpack.c.l.b16 %v46
  %v198 = vunpack.c.l.b16 %v47
  %v199 = vunpack.c.l.b16 %v48
  %v200 = vunpack.c.l.b16 %v49
  %v201 = vunpack.c.l.b16 %v50
  %v202 = vunpack.c.l.b16 %v51
  %v203 = vunpack.c.l.b16 %v52
  %v204 = vunpack.c.l.b16 %v53
  %v205 = vunpack.c.l.b16 %v54
  %v206 = vunpack.c.l.b16 %v55
  %v207 = vunpack.c.l.b16 %v56
  %v208 = vunpack.c.l.b16 %v57
  %v209 = vunpack.c.l.b16 %v58
  %v210 = vunpack.c.l.b16 %v59
  %v211 = vunpack.c.l.b16 %v60
  %v212 = vunpack.c.l.b16 %v61
  %v213 = vunpack.c.l.b16 %v62
  %v214 = vpack.c.b16 %v183, %v182
  %v215 = vpack.c.b16 %v185, %v184
  %v216 = vpack.c.b16 %v187, %v186
  %v217 = vpack.c.b16 %v189, %v188
  %v218 = vpack.c.b16 %v191, %v190
  %v219 = vpack.c.b16 %v193, %v192
  %v220 = vpack.c.b16 %v195, %v194
  %v221 = vpack.c.b16 %v197, %v196
  %v222 = vpack.c.b16 %v199, %v198
  %v223 = vpack.c.b16 %v201, %v200
  %v224 = vpack.c.b16 %v203, %v202
  %v225 = vpack.c.b16 %v205, %v204
  %v226 = vpack.c.b16 %v207, %v206
  %v227 = vpack.c.b16 %v209, %v208
  %v228 = vpack.c.b16 %v211, %v210
  %v229 = vpack.c.b16 %v213, %v212
  %246 = vmatprep.subr.bf16.mxu0 0
  %247 = vmatpush1.bf16.msra.mxu0 %v214
  %248 = vmatprep.subr.bf16.mxu0 0
  %249 = vmatpush1.bf16.msra.mxu0 %v215
  %250 = vmatprep.subr.bf16.mxu0 0
  %251 = vmatpush1.bf16.msra.mxu0 %v216
  %252 = vmatprep.subr.bf16.mxu0 0
  %253 = vmatpush1.bf16.msra.mxu0 %v217
  %254 = vmatprep.subr.bf16.mxu0 0
  %255 = vmatpush1.bf16.msra.mxu0 %v218
  %256 = vmatprep.subr.bf16.mxu0 0
  %257 = vmatpush1.bf16.msra.mxu0 %v219
  %258 = vmatprep.subr.bf16.mxu0 0
  %259 = vmatpush1.bf16.msra.mxu0 %v220
  %260 = vmatprep.subr.bf16.mxu0 0
  %261 = vmatpush1.bf16.msra.mxu0 %v221
  %262 = vmatprep.subr.bf16.mxu0 0
  %263 = vmatpush1.bf16.msra.mxu0 %v222
  %264 = vmatprep.subr.bf16.mxu0 0
  %265 = vmatpush1.bf16.msra.mxu0 %v223
  %266 = vmatprep.subr.bf16.mxu0 0
  %267 = vmatpush1.bf16.msra.mxu0 %v224
  %268 = vmatprep.subr.bf16.mxu0 0
  %269 = vmatpush1.bf16.msra.mxu0 %v225
  %270 = vmatprep.subr.bf16.mxu0 0
  %271 = vmatpush1.bf16.msra.mxu0 %v226
  %272 = vmatprep.subr.bf16.mxu0 0
  %273 = vmatpush1.bf16.msra.mxu0 %v227
  %274 = vmatprep.subr.bf16.mxu0 0
  %275 = vmatpush1.bf16.msra.mxu0 %v228
  %276 = vmatprep.subr.bf16.mxu0 0
  %277 = vmatpush1.bf16.msra.mxu0 %v229
  %278 = vmatprep.mubr.bf16.mxu0 %v119
  %279 = vmatmul.mubr.bf16.gmra.mrb[0].mxu0 %v118
  %v280 = vpop.f32.mrb[0].mxu0
  %v281 = vadd.f32 %v68, %v280
  %v282 = vpop.f32.mrb[0].mxu0
  %v283 = vpop.f32.mrb[0].mxu0
  %v284 = vadd.f32 %v68, %v283
  %v285 = vpop.f32.mrb[0].mxu0
  %286 = vmatprep.mubr.bf16.mxu0 %v121
  %287 = vmatmul.mubr.bf16.gmra.mrb[0].mxu0 %v120
  %v288 = vpop.f32.mrb[0].mxu0
  %v289 = vadd.f32 %v68, %v288
  %v290 = vpop.f32.mrb[0].mxu0
  %v291 = vpop.f32.mrb[0].mxu0
  %v292 = vadd.f32 %v68, %v291
  %v293 = vpop.f32.mrb[0].mxu0
  %294 = vmatprep.mubr.bf16.mxu0 %v123
  %295 = vmatmul.mubr.bf16.gmra.mrb[0].mxu0 %v122
  %v296 = vpop.f32.mrb[0].mxu0
  %v297 = vadd.f32 %v68, %v296
  %v298 = vpop.f32.mrb[0].mxu0
  %v299 = vpop.f32.mrb[0].mxu0
  %v300 = vadd.f32 %v68, %v299
  %v301 = vpop.f32.mrb[0].mxu0
  %302 = vmatprep.mubr.bf16.mxu0 %v125
  %303 = vmatmul.mubr.bf16.gmra.mrb[0].mxu0 %v124
  %v304 = vpop.f32.mrb[0].mxu0
  %v305 = vadd.f32 %v68, %v304
  %v306 = vpop.f32.mrb[0].mxu0
  %v307 = vpop.f32.mrb[0].mxu0
  %v308 = vadd.f32 %v68, %v307
  %v309 = vpop.f32.mrb[0].mxu0
  %310 = vmatprep.mubr.bf16.mxu0 %v127
  %311 = vmatmul.mubr.bf16.gmra.mrb[0].mxu0 %v126
  %v312 = vpop.f32.mrb[0].mxu0
  %v313 = vadd.f32 %v68, %v312
  %v314 = vpop.f32.mrb[0].mxu0
  %v315 = vpop.f32.mrb[0].mxu0
  %v316 = vadd.f32 %v68, %v315
  %v317 = vpop.f32.mrb[0].mxu0
  %318 = vmatprep.mubr.bf16.mxu0 %v129
  %319 = vmatmul.mubr.bf16.gmra.mrb[0].mxu0 %v128
  %v320 = vpop.f32.mrb[0].mxu0
  %v321 = vadd.f32 %v68, %v320
  %v322 = vpop.f32.mrb[0].mxu0
  %v323 = vpop.f32.mrb[0].mxu0
  %v324 = vadd.f32 %v68, %v323
  %v325 = vpop.f32.mrb[0].mxu0
  %326 = vmatprep.mubr.bf16.mxu0 %v131
  %327 = vmatmul.mubr.bf16.gmra.mrb[0].mxu0 %v130
  %v328 = vpop.f32.mrb[0].mxu0
  %v329 = vadd.f32 %v68, %v328
  %v330 = vpop.f32.mrb[0].mxu0
  %v331 = vpop.f32.mrb[0].mxu0
  %v332 = vadd.f32 %v68, %v331
  %v333 = vpop.f32.mrb[0].mxu0
  %334 = vmatprep.mubr.bf16.mxu0 %v133
  %335 = vmatmul.mubr.bf16.gmra.mrb[0].mxu0 %v132
  %v336 = vpop.f32.mrb[0].mxu0
  %v337 = vadd.f32 %v68, %v336
  %v338 = vpop.f32.mrb[0].mxu0
  %v339 = vpop.f32.mrb[0].mxu0
  %v340 = vadd.f32 %v68, %v339
  %v341 = vpop.f32.mrb[0].mxu0
  %342 = vdwg.mxu0
  %vm343 = vcmp.ge.f32.partialorder %v281, 0.0
  %vm344 = vcmp.ge.f32.partialorder %v284, 0.0
  %vm345 = vcmp.ge.f32.partialorder %v289, 0.0
  %vm346 = vcmp.ge.f32.partialorder %v292, 0.0
  %vm347 = vcmp.ge.f32.partialorder %v297, 0.0
  %vm348 = vcmp.ge.f32.partialorder %v300, 0.0
  %vm349 = vcmp.ge.f32.partialorder %v305, 0.0
  %vm350 = vcmp.ge.f32.partialorder %v308, 0.0
  %vm351 = vcmp.ge.f32.partialorder %v313, 0.0
  %vm352 = vcmp.ge.f32.partialorder %v316, 0.0
  %vm353 = vcmp.ge.f32.partialorder %v321, 0.0
  %vm354 = vcmp.ge.f32.partialorder %v324, 0.0
  %vm355 = vcmp.ge.f32.partialorder %v329, 0.0
  %vm356 = vcmp.ge.f32.partialorder %v332, 0.0
  %vm357 = vcmp.ge.f32.partialorder %v337, 0.0
  %vm358 = vcmp.ge.f32.partialorder %v340, 0.0
  %v359 = vmul.f32 %v281, 0.01
  %v360 = vmul.f32 %v284, 0.01
  %v361 = vmul.f32 %v289, 0.01
  %v362 = vmul.f32 %v292, 0.01
  %v363 = vmul.f32 %v297, 0.01
  %v364 = vmul.f32 %v300, 0.01
  %v365 = vmul.f32 %v305, 0.01
  %v366 = vmul.f32 %v308, 0.01
  %v367 = vmul.f32 %v313, 0.01
  %v368 = vmul.f32 %v316, 0.01
  %v369 = vmul.f32 %v321, 0.01
  %v370 = vmul.f32 %v324, 0.01
  %v371 = vmul.f32 %v329, 0.01
  %v372 = vmul.f32 %v332, 0.01
  %v373 = vmul.f32 %v337, 0.01
  %v374 = vmul.f32 %v340, 0.01
  %v375 = vsel %vm343, %v281, %v359
  %v376 = vsel %vm344, %v284, %v360
  %v377 = vsel %vm345, %v289, %v361
  %v378 = vsel %vm346, %v292, %v362
  %v379 = vsel %vm347, %v297, %v363
  %v380 = vsel %vm348, %v300, %v364
  %v381 = vsel %vm349, %v305, %v365
  %v382 = vsel %vm350, %v308, %v366
  %v383 = vsel %vm351, %v313, %v367
  %v384 = vsel %vm352, %v316, %v368
  %v385 = vsel %vm353, %v321, %v369
  %v386 = vsel %vm354, %v324, %v370
  %v387 = vsel %vm355, %v329, %v371
  %v388 = vsel %vm356, %v332, %v372
  %v389 = vsel %vm357, %v337, %v373
  %v390 = vsel %vm358, %v340, %v374
  %v391 = vpack.c.bf16 %v376, %v375
  %v392 = vpack.c.bf16 %v378, %v377
  %v393 = vpack.c.bf16 %v380, %v379
  %v394 = vpack.c.bf16 %v382, %v381
  %v395 = vpack.c.bf16 %v384, %v383
  %v396 = vpack.c.bf16 %v386, %v385
  %v397 = vpack.c.bf16 %v388, %v387
  %v398 = vpack.c.bf16 %v390, %v389
  %v407 = vunpack.c.l.b16 %v391
  %v408 = vunpack.c.h.b16 %v391
  %v409 = vunpack.c.l.b16 %v392
  %v410 = vunpack.c.h.b16 %v392
  %v411 = vunpack.c.l.b16 %v393
  %v412 = vunpack.c.h.b16 %v393
  %v413 = vunpack.c.l.b16 %v394
  %v414 = vunpack.c.h.b16 %v394
  %v415 = vunpack.c.l.b16 %v395
  %v416 = vunpack.c.h.b16 %v395
  %v417 = vunpack.c.l.b16 %v396
  %v418 = vunpack.c.h.b16 %v396
  %v419 = vunpack.c.l.b16 %v397
  %v420 = vunpack.c.h.b16 %v397
  %v421 = vunpack.c.l.b16 %v398
  %v422 = vunpack.c.h.b16 %v398
  %v423 = vpack.c.b16 %v407, %v407
  %v424 = vpack.c.b16 %v408, %v408
  %v425 = vpack.c.b16 %v409, %v409
  %v426 = vpack.c.b16 %v410, %v410
  %v427 = vpack.c.b16 %v411, %v411
  %v428 = vpack.c.b16 %v412, %v412
  %v429 = vpack.c.b16 %v413, %v413
  %v430 = vpack.c.b16 %v414, %v414
  %v431 = vpack.c.b16 %v415, %v415
  %v432 = vpack.c.b16 %v416, %v416
  %v433 = vpack.c.b16 %v417, %v417
  %v434 = vpack.c.b16 %v418, %v418
  %v435 = vpack.c.b16 %v419, %v419
  %v436 = vpack.c.b16 %v420, %v420
  %v437 = vpack.c.b16 %v421, %v421
  %v438 = vpack.c.b16 %v422, %v422
  %vm455 = vcmask 519168
  %456 = vst.msk [vmem:[%s3] sm:$0xf] %vm455, %v423
  %457 = vst.msk [vmem:[%s3 + $0x4] sm:$0xf] %vm455, %v424
  %458 = vst.msk [vmem:[%s3 + $0x8] sm:$0xf] %vm455, %v425
  %459 = vst.msk [vmem:[%s3 + $0xc] sm:$0xf] %vm455, %v426
  %460 = vst.msk [vmem:[%s3 + $0x10] sm:$0xf] %vm455, %v427
  %461 = vst.msk [vmem:[%s3 + $0x14] sm:$0xf] %vm455, %v428
  %462 = vst.msk [vmem:[%s3 + $0x18] sm:$0xf] %vm455, %v429
  %463 = vst.msk [vmem:[%s3 + $0x1c] sm:$0xf] %vm455, %v430
  %464 = vst.msk [vmem:[%s3 + $0x20] sm:$0xf] %vm455, %v431
  %465 = vst.msk [vmem:[%s3 + $0x24] sm:$0xf] %vm455, %v432
  %466 = vst.msk [vmem:[%s3 + $0x28] sm:$0xf] %vm455, %v433
  %467 = vst.msk [vmem:[%s3 + $0x2c] sm:$0xf] %vm455, %v434
  %468 = vst.msk [vmem:[%s3 + $0x30] sm:$0xf] %vm455, %v435
  %469 = vst.msk [vmem:[%s3 + $0x34] sm:$0xf] %vm455, %v436
  %470 = vst.msk [vmem:[%s3 + $0x38] sm:$0xf] %vm455, %v437
  %471 = vst.msk [vmem:[%s3 + $0x3c] sm:$0xf] %vm455, %v438
  // Predicated region
  $region14: #{cnn_base_forward.3} parent=0 // pred_check
    _
  $region15: #{cnn_base_forward.3} parent=0 // pred_check_branch
    %473 = sbr.rel (0) target = $region17
  $region16: #{cnn_base_forward.3} parent=0 // pred_region
    _
  $region17: #{cnn_base_forward.3} parent=0 // pred_fallthru
    _
  // Predicated region
  $region18: #{cnn_base_forward.3} parent=0 // pred_check
    _
  $region19: #{cnn_base_forward.3} parent=0 // pred_check_branch
    %475 = sbr.rel (0) target = $region21
  $region20: #{cnn_base_forward.3} parent=0 // pred_region
    _
  $region21: #{cnn_base_forward.3} parent=0 // pred_fallthru
    _

// kernel: cnn_base_forward.4
$region0: #{cnn_base_forward.4}
  #allocation0 [shape = 'u32[]', space=smem, size = 0x4, offset = 0x4, fixed_abs, tag = 'smem constant byte address 0x4 - core index']
  #allocation1 [shape = 'u32[144,128]{1,0:T(1,128)}', space=vmem, size = 0x12000, scoped, tag = 'internal scratch']
  %s0 = inlined_call_operand.vmem [shape: bf16[18,1024], index: 0, kind: input, shape index: {}]
  %s1 = inlined_call_operand.vmem [shape: bf16[1024,128], index: 1, kind: input, shape index: {}]
  %s2 = inlined_call_operand.vmem [shape: f32[1,128], index: 2, kind: input, shape index: {}]
  %s3 = inlined_call_operand.vmem [shape: bf16[18,128], index: 3, kind: output, shape index: {}]
  %s4 = sld [smem:[#allocation0]]
  $region22: #{cnn_base_forward.4} parent=0
    _
  %s6 = ssub.s32 1, %s4
  %s7 = scalar_select 0, %s6, %s4
  // Predicated region
  $region2: #{cnn_base_forward.4} parent=0 // pred_check
    _
  $region3: #{cnn_base_forward.4} parent=0 // pred_check_branch
    %9 = sbr.rel (0) target = $region5
  $region4: #{cnn_base_forward.4} parent=0 // pred_region
    _
  $region5: #{cnn_base_forward.4} parent=0 // pred_fallthru
    _
  // Predicated region
  $region6: #{cnn_base_forward.4} parent=0 // pred_check
    _
  $region7: #{cnn_base_forward.4} parent=0 // pred_check_branch
    %11 = sbr.rel (0) target = $region9
  $region8: #{cnn_base_forward.4} parent=0 // pred_region
    _
  $region9: #{cnn_base_forward.4} parent=0 // pred_fallthru
    _
  // Predicated region
  $region10: #{cnn_base_forward.4} parent=0 // pred_check
    _
  $region11: #{cnn_base_forward.4} parent=0 // pred_check_branch
    %13 = sbr.rel (0) target = $region13
  $region12: #{cnn_base_forward.4} parent=0 // pred_region
    _
  $region13: #{cnn_base_forward.4} parent=0 // pred_fallthru
    _
  %v15 = vld [vmem:[%s0] sm:$0xff]
  %v16 = vld [vmem:[%s0 + $0x8] sm:$0xff]
  %v17 = vld [vmem:[%s0 + $0x10] sm:$0xff]
  %v18 = vld [vmem:[%s0 + $0x18] sm:$0xff]
  %v19 = vld [vmem:[%s0 + $0x20] sm:$0xff]
  %v20 = vld [vmem:[%s0 + $0x28] sm:$0xff]
  %v21 = vld [vmem:[%s0 + $0x30] sm:$0xff]
  %v22 = vld [vmem:[%s0 + $0x38] sm:$0xff]
  %v23 = vld [vmem:[%s0 + $0x40] sm:$0x11]
  %v24 = vld [vmem:[%s0 + $0x48] sm:$0x11]
  %v25 = vld [vmem:[%s0 + $0x50] sm:$0x11]
  %v26 = vld [vmem:[%s0 + $0x58] sm:$0x11]
  %v27 = vld [vmem:[%s1] sm:$0xf]
  %v28 = vld [vmem:[%s1 + $0x4] sm:$0xf]
  %v29 = vld [vmem:[%s1 + $0x8] sm:$0xf]
  %v30 = vld [vmem:[%s1 + $0xc] sm:$0xf]
  %v31 = vld [vmem:[%s1 + $0x10] sm:$0xf]
  %v32 = vld [vmem:[%s1 + $0x14] sm:$0xf]
  %v33 = vld [vmem:[%s1 + $0x18] sm:$0xf]
  %v34 = vld [vmem:[%s1 + $0x1c] sm:$0xf]
  %v35 = vld [vmem:[%s1 + $0x20] sm:$0xf]
  %v36 = vld [vmem:[%s1 + $0x24] sm:$0xf]
  %v37 = vld [vmem:[%s1 + $0x28] sm:$0xf]
  %v38 = vld [vmem:[%s1 + $0x2c] sm:$0xf]
  %v39 = vld [vmem:[%s1 + $0x30] sm:$0xf]
  %v40 = vld [vmem:[%s1 + $0x34] sm:$0xf]
  %v41 = vld [vmem:[%s1 + $0x38] sm:$0xf]
  %v42 = vld [vmem:[%s1 + $0x3c] sm:$0xf]
  %v43 = vld [vmem:[%s1 + $0x40] sm:$0xf]
  %v44 = vld [vmem:[%s1 + $0x44] sm:$0xf]
  %v45 = vld [vmem:[%s1 + $0x48] sm:$0xf]
  %v46 = vld [vmem:[%s1 + $0x4c] sm:$0xf]
  %v47 = vld [vmem:[%s1 + $0x50] sm:$0xf]
  %v48 = vld [vmem:[%s1 + $0x54] sm:$0xf]
  %v49 = vld [vmem:[%s1 + $0x58] sm:$0xf]
  %v50 = vld [vmem:[%s1 + $0x5c] sm:$0xf]
  %v51 = vld [vmem:[%s1 + $0x60] sm:$0xf]
  %v52 = vld [vmem:[%s1 + $0x64] sm:$0xf]
  %v53 = vld [vmem:[%s1 + $0x68] sm:$0xf]
  %v54 = vld [vmem:[%s1 + $0x6c] sm:$0xf]
  %v55 = vld [vmem:[%s1 + $0x70] sm:$0xf]
  %v56 = vld [vmem:[%s1 + $0x74] sm:$0xf]
  %v57 = vld [vmem:[%s1 + $0x78] sm:$0xf]
  %v58 = vld [vmem:[%s1 + $0x7c] sm:$0xf]
  %v59 = vld [vmem:[%s1 + $0x80] sm:$0xf]
  %v60 = vld [vmem:[%s1 + $0x84] sm:$0xf]
  %v61 = vld [vmem:[%s1 + $0x88] sm:$0xf]
  %v62 = vld [vmem:[%s1 + $0x8c] sm:$0xf]
  %v63 = vld [vmem:[%s1 + $0x90] sm:$0xf]
  %v64 = vld [vmem:[%s1 + $0x94] sm:$0xf]
  %v65 = vld [vmem:[%s1 + $0x98] sm:$0xf]
  %v66 = vld [vmem:[%s1 + $0x9c] sm:$0xf]
  %v67 = vld [vmem:[%s1 + $0xa0] sm:$0xf]
  %v68 = vld [vmem:[%s1 + $0xa4] sm:$0xf]
  %v69 = vld [vmem:[%s1 + $0xa8] sm:$0xf]
  %v70 = vld [vmem:[%s1 + $0xac] sm:$0xf]
  %v71 = vld [vmem:[%s1 + $0xb0] sm:$0xf]
  %v72 = vld [vmem:[%s1 + $0xb4] sm:$0xf]
  %v73 = vld [vmem:[%s1 + $0xb8] sm:$0xf]
  %v74 = vld [vmem:[%s1 + $0xbc] sm:$0xf]
  %v75 = vld [vmem:[%s1 + $0xc0] sm:$0xf]
  %v76 = vld [vmem:[%s1 + $0xc4] sm:$0xf]
  %v77 = vld [vmem:[%s1 + $0xc8] sm:$0xf]
  %v78 = vld [vmem:[%s1 + $0xcc] sm:$0xf]
  %v79 = vld [vmem:[%s1 + $0xd0] sm:$0xf]
  %v80 = vld [vmem:[%s1 + $0xd4] sm:$0xf]
  %v81 = vld [vmem:[%s1 + $0xd8] sm:$0xf]
  %v82 = vld [vmem:[%s1 + $0xdc] sm:$0xf]
  %v83 = vld [vmem:[%s1 + $0xe0] sm:$0xf]
  %v84 = vld [vmem:[%s1 + $0xe4] sm:$0xf]
  %v85 = vld [vmem:[%s1 + $0xe8] sm:$0xf]
  %v86 = vld [vmem:[%s1 + $0xec] sm:$0xf]
  %v87 = vld [vmem:[%s1 + $0xf0] sm:$0xf]
  %v88 = vld [vmem:[%s1 + $0xf4] sm:$0xf]
  %v89 = vld [vmem:[%s1 + $0xf8] sm:$0xf]
  %v90 = vld [vmem:[%s1 + $0xfc] sm:$0xf]
  %v91 = vld [vmem:[%s1 + $0x100] sm:$0xf]
  %v92 = vld [vmem:[%s1 + $0x104] sm:$0xf]
  %v93 = vld [vmem:[%s1 + $0x108] sm:$0xf]
  %v94 = vld [vmem:[%s1 + $0x10c] sm:$0xf]
  %v95 = vld [vmem:[%s1 + $0x110] sm:$0xf]
  %v96 = vld [vmem:[%s1 + $0x114] sm:$0xf]
  %v97 = vld [vmem:[%s1 + $0x118] sm:$0xf]
  %v98 = vld [vmem:[%s1 + $0x11c] sm:$0xf]
  %v99 = vld [vmem:[%s1 + $0x120] sm:$0xf]
  %v100 = vld [vmem:[%s1 + $0x124] sm:$0xf]
  %v101 = vld [vmem:[%s1 + $0x128] sm:$0xf]
  %v102 = vld [vmem:[%s1 + $0x12c] sm:$0xf]
  %v103 = vld [vmem:[%s1 + $0x130] sm:$0xf]
  %v104 = vld [vmem:[%s1 + $0x134] sm:$0xf]
  %v105 = vld [vmem:[%s1 + $0x138] sm:$0xf]
  %v106 = vld [vmem:[%s1 + $0x13c] sm:$0xf]
  %v107 = vld [vmem:[%s1 + $0x140] sm:$0xf]
  %v108 = vld [vmem:[%s1 + $0x144] sm:$0xf]
  %v109 = vld [vmem:[%s1 + $0x148] sm:$0xf]
  %v110 = vld [vmem:[%s1 + $0x14c] sm:$0xf]
  %v111 = vld [vmem:[%s1 + $0x150] sm:$0xf]
  %v112 = vld [vmem:[%s1 + $0x154] sm:$0xf]
  %v113 = vld [vmem:[%s1 + $0x158] sm:$0xf]
  %v114 = vld [vmem:[%s1 + $0x15c] sm:$0xf]
  %v115 = vld [vmem:[%s1 + $0x160] sm:$0xf]
  %v116 = vld [vmem:[%s1 + $0x164] sm:$0xf]
  %v117 = vld [vmem:[%s1 + $0x168] sm:$0xf]
  %v118 = vld [vmem:[%s1 + $0x16c] sm:$0xf]
  %v119 = vld [vmem:[%s1 + $0x170] sm:$0xf]
  %v120 = vld [vmem:[%s1 + $0x174] sm:$0xf]
  %v121 = vld [vmem:[%s1 + $0x178] sm:$0xf]
  %v122 = vld [vmem:[%s1 + $0x17c] sm:$0xf]
  %v123 = vld [vmem:[%s1 + $0x180] sm:$0xf]
  %v124 = vld [vmem:[%s1 + $0x184] sm:$0xf]
  %v125 = vld [vmem:[%s1 + $0x188] sm:$0xf]
  %v126 = vld [vmem:[%s1 + $0x18c] sm:$0xf]
  %v127 = vld [vmem:[%s1 + $0x190] sm:$0xf]
  %v128 = vld [vmem:[%s1 + $0x194] sm:$0xf]
  %v129 = vld [vmem:[%s1 + $0x198] sm:$0xf]
  %v130 = vld [vmem:[%s1 + $0x19c] sm:$0xf]
  %v131 = vld [vmem:[%s1 + $0x1a0] sm:$0xf]
  %v132 = vld [vmem:[%s1 + $0x1a4] sm:$0xf]
  %v133 = vld [vmem:[%s1 + $0x1a8] sm:$0xf]
  %v134 = vld [vmem:[%s1 + $0x1ac] sm:$0xf]
  %v135 = vld [vmem:[%s1 + $0x1b0] sm:$0xf]
  %v136 = vld [vmem:[%s1 + $0x1b4] sm:$0xf]
  %v137 = vld [vmem:[%s1 + $0x1b8] sm:$0xf]
  %v138 = vld [vmem:[%s1 + $0x1bc] sm:$0xf]
  %v139 = vld [vmem:[%s1 + $0x1c0] sm:$0xf]
  %v140 = vld [vmem:[%s1 + $0x1c4] sm:$0xf]
  %v141 = vld [vmem:[%s1 + $0x1c8] sm:$0xf]
  %v142 = vld [vmem:[%s1 + $0x1cc] sm:$0xf]
  %v143 = vld [vmem:[%s1 + $0x1d0] sm:$0xf]
  %v144 = vld [vmem:[%s1 + $0x1d4] sm:$0xf]
  %v145 = vld [vmem:[%s1 + $0x1d8] sm:$0xf]
  %v146 = vld [vmem:[%s1 + $0x1dc] sm:$0xf]
  %v147 = vld [vmem:[%s1 + $0x1e0] sm:$0xf]
  %v148 = vld [vmem:[%s1 + $0x1e4] sm:$0xf]
  %v149 = vld [vmem:[%s1 + $0x1e8] sm:$0xf]
  %v150 = vld [vmem:[%s1 + $0x1ec] sm:$0xf]
  %v151 = vld [vmem:[%s1 + $0x1f0] sm:$0xf]
  %v152 = vld [vmem:[%s1 + $0x1f4] sm:$0xf]
  %v153 = vld [vmem:[%s1 + $0x1f8] sm:$0xf]
  %v154 = vld [vmem:[%s1 + $0x1fc] sm:$0xf]
  %v155 = vld [vmem:[%s2] sm:$0x1]
  %v157 = vlaneseq
  %v158 = vshrl.u32 %v157, 7
  %v159 = vsub.s32 0, %v158
  %v160 = vrot.slane %v155, %v159
  %v174 = vunpack.c.l.b16 %v15
  %v175 = vunpack.c.h.b16 %v15
  %v176 = vunpack.c.l.b16 %v16
  %v177 = vunpack.c.h.b16 %v16
  %v178 = vunpack.c.l.b16 %v17
  %v179 = vunpack.c.h.b16 %v17
  %v180 = vunpack.c.l.b16 %v18
  %v181 = vunpack.c.h.b16 %v18
  %v182 = vunpack.c.l.b16 %v19
  %v183 = vunpack.c.h.b16 %v19
  %v184 = vunpack.c.l.b16 %v20
  %v185 = vunpack.c.h.b16 %v20
  %v186 = vunpack.c.l.b16 %v21
  %v187 = vunpack.c.h.b16 %v21
  %v188 = vunpack.c.l.b16 %v22
  %v189 = vunpack.c.h.b16 %v22
  %v190 = vunpack.c.l.b16 %v23
  %v191 = vunpack.c.h.b16 %v23
  %v192 = vunpack.c.l.b16 %v24
  %v193 = vunpack.c.h.b16 %v24
  %v194 = vunpack.c.l.b16 %v25
  %v195 = vunpack.c.h.b16 %v25
  %v196 = vunpack.c.l.b16 %v26
  %v197 = vunpack.c.h.b16 %v26
  %v198 = vpack.c.b16 %v182, %v174
  %v199 = vpack.c.b16 %v183, %v175
  %v200 = vpack.c.b16 %v184, %v176
  %v201 = vpack.c.b16 %v185, %v177
  %v202 = vpack.c.b16 %v186, %v178
  %v203 = vpack.c.b16 %v187, %v179
  %v204 = vpack.c.b16 %v188, %v180
  %v205 = vpack.c.b16 %v189, %v181
  %v206 = vpack.c.b16 %v190, %v190
  %v207 = vpack.c.b16 %v191, %v191
  %v208 = vpack.c.b16 %v192, %v192
  %v209 = vpack.c.b16 %v193, %v193
  %v210 = vpack.c.b16 %v194, %v194
  %v211 = vpack.c.b16 %v195, %v195
  %v212 = vpack.c.b16 %v196, %v196
  %v213 = vpack.c.b16 %v197, %v197
  %v358 = vunpack.c.l.b16 %v27
  %v359 = vunpack.c.l.b16 %v28
  %v360 = vunpack.c.l.b16 %v29
  %v361 = vunpack.c.l.b16 %v30
  %v362 = vunpack.c.l.b16 %v31
  %v363 = vunpack.c.l.b16 %v32
  %v364 = vunpack.c.l.b16 %v33
  %v365 = vunpack.c.l.b16 %v34
  %v366 = vunpack.c.l.b16 %v35
  %v367 = vunpack.c.l.b16 %v36
  %v368 = vunpack.c.l.b16 %v37
  %v369 = vunpack.c.l.b16 %v38
  %v370 = vunpack.c.l.b16 %v39
  %v371 = vunpack.c.l.b16 %v40
  %v372 = vunpack.c.l.b16 %v41
  %v373 = vunpack.c.l.b16 %v42
  %v374 = vunpack.c.l.b16 %v43
  %v375 = vunpack.c.l.b16 %v44
  %v376 = vunpack.c.l.b16 %v45
  %v377 = vunpack.c.l.b16 %v46
  %v378 = vunpack.c.l.b16 %v47
  %v379 = vunpack.c.l.b16 %v48
  %v380 = vunpack.c.l.b16 %v49
  %v381 = vunpack.c.l.b16 %v50
  %v382 = vunpack.c.l.b16 %v51
  %v383 = vunpack.c.l.b16 %v52
  %v384 = vunpack.c.l.b16 %v53
  %v385 = vunpack.c.l.b16 %v54
  %v386 = vunpack.c.l.b16 %v55
  %v387 = vunpack.c.l.b16 %v56
  %v388 = vunpack.c.l.b16 %v57
  %v389 = vunpack.c.l.b16 %v58
  %v390 = vunpack.c.l.b16 %v59
  %v391 = vunpack.c.l.b16 %v60
  %v392 = vunpack.c.l.b16 %v61
  %v393 = vunpack.c.l.b16 %v62
  %v394 = vunpack.c.l.b16 %v63
  %v395 = vunpack.c.l.b16 %v64
  %v396 = vunpack.c.l.b16 %v65
  %v397 = vunpack.c.l.b16 %v66
  %v398 = vunpack.c.l.b16 %v67
  %v399 = vunpack.c.l.b16 %v68
  %v400 = vunpack.c.l.b16 %v69
  %v401 = vunpack.c.l.b16 %v70
  %v402 = vunpack.c.l.b16 %v71
  %v403 = vunpack.c.l.b16 %v72
  %v404 = vunpack.c.l.b16 %v73
  %v405 = vunpack.c.l.b16 %v74
  %v406 = vunpack.c.l.b16 %v75
  %v407 = vunpack.c.l.b16 %v76
  %v408 = vunpack.c.l.b16 %v77
  %v409 = vunpack.c.l.b16 %v78
  %v410 = vunpack.c.l.b16 %v79
  %v411 = vunpack.c.l.b16 %v80
  %v412 = vunpack.c.l.b16 %v81
  %v413 = vunpack.c.l.b16 %v82
  %v414 = vunpack.c.l.b16 %v83
  %v415 = vunpack.c.l.b16 %v84
  %v416 = vunpack.c.l.b16 %v85
  %v417 = vunpack.c.l.b16 %v86
  %v418 = vunpack.c.l.b16 %v87
  %v419 = vunpack.c.l.b16 %v88
  %v420 = vunpack.c.l.b16 %v89
  %v421 = vunpack.c.l.b16 %v90
  %v422 = vunpack.c.l.b16 %v91
  %v423 = vunpack.c.l.b16 %v92
  %v424 = vunpack.c.l.b16 %v93
  %v425 = vunpack.c.l.b16 %v94
  %v426 = vunpack.c.l.b16 %v95
  %v427 = vunpack.c.l.b16 %v96
  %v428 = vunpack.c.l.b16 %v97
  %v429 = vunpack.c.l.b16 %v98
  %v430 = vunpack.c.l.b16 %v99
  %v431 = vunpack.c.l.b16 %v100
  %v432 = vunpack.c.l.b16 %v101
  %v433 = vunpack.c.l.b16 %v102
  %v434 = vunpack.c.l.b16 %v103
  %v435 = vunpack.c.l.b16 %v104
  %v436 = vunpack.c.l.b16 %v105
  %v437 = vunpack.c.l.b16 %v106
  %v438 = vunpack.c.l.b16 %v107
  %v439 = vunpack.c.l.b16 %v108
  %v440 = vunpack.c.l.b16 %v109
  %v441 = vunpack.c.l.b16 %v110
  %v442 = vunpack.c.l.b16 %v111
  %v443 = vunpack.c.l.b16 %v112
  %v444 = vunpack.c.l.b16 %v113
  %v445 = vunpack.c.l.b16 %v114
  %v446 = vunpack.c.l.b16 %v115
  %v447 = vunpack.c.l.b16 %v116
  %v448 = vunpack.c.l.b16 %v117
  %v449 = vunpack.c.l.b16 %v118
  %v450 = vunpack.c.l.b16 %v119
  %v451 = vunpack.c.l.b16 %v120
  %v452 = vunpack.c.l.b16 %v121
  %v453 = vunpack.c.l.b16 %v122
  %v454 = vunpack.c.l.b16 %v123
  %v455 = vunpack.c.l.b16 %v124
  %v456 = vunpack.c.l.b16 %v125
  %v457 = vunpack.c.l.b16 %v126
  %v458 = vunpack.c.l.b16 %v127
  %v459 = vunpack.c.l.b16 %v128
  %v460 = vunpack.c.l.b16 %v129
  %v461 = vunpack.c.l.b16 %v130
  %v462 = vunpack.c.l.b16 %v131
  %v463 = vunpack.c.l.b16 %v132
  %v464 = vunpack.c.l.b16 %v133
  %v465 = vunpack.c.l.b16 %v134
  %v466 = vunpack.c.l.b16 %v135
  %v467 = vunpack.c.l.b16 %v136
  %v468 = vunpack.c.l.b16 %v137
  %v469 = vunpack.c.l.b16 %v138
  %v470 = vunpack.c.l.b16 %v139
  %v471 = vunpack.c.l.b16 %v140
  %v472 = vunpack.c.l.b16 %v141
  %v473 = vunpack.c.l.b16 %v142
  %v474 = vunpack.c.l.b16 %v143
  %v475 = vunpack.c.l.b16 %v144
  %v476 = vunpack.c.l.b16 %v145
  %v477 = vunpack.c.l.b16 %v146
  %v478 = vunpack.c.l.b16 %v147
  %v479 = vunpack.c.l.b16 %v148
  %v480 = vunpack.c.l.b16 %v149
  %v481 = vunpack.c.l.b16 %v150
  %v482 = vunpack.c.l.b16 %v151
  %v483 = vunpack.c.l.b16 %v152
  %v484 = vunpack.c.l.b16 %v153
  %v485 = vunpack.c.l.b16 %v154
  %v486 = vpack.c.b16 %v359, %v358
  %v487 = vpack.c.b16 %v361, %v360
  %v488 = vpack.c.b16 %v363, %v362
  %v489 = vpack.c.b16 %v365, %v364
  %v490 = vpack.c.b16 %v367, %v366
  %v491 = vpack.c.b16 %v369, %v368
  %v492 = vpack.c.b16 %v371, %v370
  %v493 = vpack.c.b16 %v373, %v372
  %v494 = vpack.c.b16 %v375, %v374
  %v495 = vpack.c.b16 %v377, %v376
  %v496 = vpack.c.b16 %v379, %v378
  %v497 = vpack.c.b16 %v381, %v380
  %v498 = vpack.c.b16 %v383, %v382
  %v499 = vpack.c.b16 %v385, %v384
  %v500 = vpack.c.b16 %v387, %v386
  %v501 = vpack.c.b16 %v389, %v388
  %v502 = vpack.c.b16 %v391, %v390
  %v503 = vpack.c.b16 %v393, %v392
  %v504 = vpack.c.b16 %v395, %v394
  %v505 = vpack.c.b16 %v397, %v396
  %v506 = vpack.c.b16 %v399, %v398
  %v507 = vpack.c.b16 %v401, %v400
  %v508 = vpack.c.b16 %v403, %v402
  %v509 = vpack.c.b16 %v405, %v404
  %v510 = vpack.c.b16 %v407, %v406
  %v511 = vpack.c.b16 %v409, %v408
  %v512 = vpack.c.b16 %v411, %v410
  %v513 = vpack.c.b16 %v413, %v412
  %v514 = vpack.c.b16 %v415, %v414
  %v515 = vpack.c.b16 %v417, %v416
  %v516 = vpack.c.b16 %v419, %v418
  %v517 = vpack.c.b16 %v421, %v420
  %v518 = vpack.c.b16 %v423, %v422
  %v519 = vpack.c.b16 %v425, %v424
  %v520 = vpack.c.b16 %v427, %v426
  %v521 = vpack.c.b16 %v429, %v428
  %v522 = vpack.c.b16 %v431, %v430
  %v523 = vpack.c.b16 %v433, %v432
  %v524 = vpack.c.b16 %v435, %v434
  %v525 = vpack.c.b16 %v437, %v436
  %v526 = vpack.c.b16 %v439, %v438
  %v527 = vpack.c.b16 %v441, %v440
  %v528 = vpack.c.b16 %v443, %v442
  %v529 = vpack.c.b16 %v445, %v444
  %v530 = vpack.c.b16 %v447, %v446
  %v531 = vpack.c.b16 %v449, %v448
  %v532 = vpack.c.b16 %v451, %v450
  %v533 = vpack.c.b16 %v453, %v452
  %v534 = vpack.c.b16 %v455, %v454
  %v535 = vpack.c.b16 %v457, %v456
  %v536 = vpack.c.b16 %v459, %v458
  %v537 = vpack.c.b16 %v461, %v460
  %v538 = vpack.c.b16 %v463, %v462
  %v539 = vpack.c.b16 %v465, %v464
  %v540 = vpack.c.b16 %v467, %v466
  %v541 = vpack.c.b16 %v469, %v468
  %v542 = vpack.c.b16 %v471, %v470
  %v543 = vpack.c.b16 %v473, %v472
  %v544 = vpack.c.b16 %v475, %v474
  %v545 = vpack.c.b16 %v477, %v476
  %v546 = vpack.c.b16 %v479, %v478
  %v547 = vpack.c.b16 %v481, %v480
  %v548 = vpack.c.b16 %v483, %v482
  %v549 = vpack.c.b16 %v485, %v484
  %614 = vmatprep.subr.bf16.mxu0 0
  %615 = vmatpush1.bf16.msra.mxu0 %v486
  %616 = vmatprep.subr.bf16.mxu0 0
  %617 = vmatpush1.bf16.msra.mxu0 %v487
  %618 = vmatprep.subr.bf16.mxu0 0
  %619 = vmatpush1.bf16.msra.mxu0 %v488
  %620 = vmatprep.subr.bf16.mxu0 0
  %621 = vmatpush1.bf16.msra.mxu0 %v489
  %622 = vmatprep.subr.bf16.mxu0 0
  %623 = vmatpush1.bf16.msra.mxu0 %v490
  %624 = vmatprep.subr.bf16.mxu0 0
  %625 = vmatpush1.bf16.msra.mxu0 %v491
  %626 = vmatprep.subr.bf16.mxu0 0
  %627 = vmatpush1.bf16.msra.mxu0 %v492
  %628 = vmatprep.subr.bf16.mxu0 0
  %629 = vmatpush1.bf16.msra.mxu0 %v493
  %630 = vmatprep.subr.bf16.mxu0 0
  %631 = vmatpush1.bf16.msra.mxu0 %v494
  %632 = vmatprep.subr.bf16.mxu0 0
  %633 = vmatpush1.bf16.msra.mxu0 %v495
  %634 = vmatprep.subr.bf16.mxu0 0
  %635 = vmatpush1.bf16.msra.mxu0 %v496
  %636 = vmatprep.subr.bf16.mxu0 0
  %637 = vmatpush1.bf16.msra.mxu0 %v497
  %638 = vmatprep.subr.bf16.mxu0 0
  %639 = vmatpush1.bf16.msra.mxu0 %v498
  %640 = vmatprep.subr.bf16.mxu0 0
  %641 = vmatpush1.bf16.msra.mxu0 %v499
  %642 = vmatprep.subr.bf16.mxu0 0
  %643 = vmatpush1.bf16.msra.mxu0 %v500
  %644 = vmatprep.subr.bf16.mxu0 0
  %645 = vmatpush1.bf16.msra.mxu0 %v501
  %646 = vmatprep.mubr.bf16.mxu0 %v199
  %647 = vmatmul.mubr.bf16.gmra.mrb[0].mxu0 %v198
  %v648 = vpop.f32.mrb[0].mxu0
  %v649 = vadd.f32 %v160, %v648
  %v650 = vpop.f32.mrb[0].mxu0
  %v651 = vpop.f32.mrb[0].mxu0
  %v652 = vadd.f32 %v160, %v651
  %v653 = vpop.f32.mrb[0].mxu0
  %654 = vmatprep.mubr.bf16.mxu0 %v207
  %655 = vmatmul.mubr.bf16.gmra.mrb[0].mxu0 %v206
  %v656 = vpop.f32.mrb[0].mxu0
  %v657 = vadd.f32 %v160, %v656
  %v658 = vpop.f32.mrb[0].mxu0
  %v659 = vpop.f32.mrb[0].mxu0
  %v660 = vpop.f32.mrb[0].mxu0
  %661 = vdwg.mxu0
  %662 = vmatprep.subr.bf16.mxu0 0
  %663 = vmatpush1.bf16.msra.mxu0 %v502
  %664 = vmatprep.subr.bf16.mxu0 0
  %665 = vmatpush1.bf16.msra.mxu0 %v503
  %666 = vmatprep.subr.bf16.mxu0 0
  %667 = vmatpush1.bf16.msra.mxu0 %v504
  %668 = vmatprep.subr.bf16.mxu0 0
  %669 = vmatpush1.bf16.msra.mxu0 %v505
  %670 = vmatprep.subr.bf16.mxu0 0
  %671 = vmatpush1.bf16.msra.mxu0 %v506
  %672 = vmatprep.subr.bf16.mxu0 0
  %673 = vmatpush1.bf16.msra.mxu0 %v507
  %674 = vmatprep.subr.bf16.mxu0 0
  %675 = vmatpush1.bf16.msra.mxu0 %v508
  %676 = vmatprep.subr.bf16.mxu0 0
  %677 = vmatpush1.bf16.msra.mxu0 %v509
  %678 = vmatprep.subr.bf16.mxu0 0
  %679 = vmatpush1.bf16.msra.mxu0 %v510
  %680 = vmatprep.subr.bf16.mxu0 0
  %681 = vmatpush1.bf16.msra.mxu0 %v511
  %682 = vmatprep.subr.bf16.mxu0 0
  %683 = vmatpush1.bf16.msra.mxu0 %v512
  %684 = vmatprep.subr.bf16.mxu0 0
  %685 = vmatpush1.bf16.msra.mxu0 %v513
  %686 = vmatprep.subr.bf16.mxu0 0
  %687 = vmatpush1.bf16.msra.mxu0 %v514
  %688 = vmatprep.subr.bf16.mxu0 0
  %689 = vmatpush1.bf16.msra.mxu0 %v515
  %690 = vmatprep.subr.bf16.mxu0 0
  %691 = vmatpush1.bf16.msra.mxu0 %v516
  %692 = vmatprep.subr.bf16.mxu0 0
  %693 = vmatpush1.bf16.msra.mxu0 %v517
  %694 = vmatprep.mubr.bf16.mxu0 %v201
  %695 = vmatmul.mubr.bf16.gmra.mrb[0].mxu0 %v200
  %v696 = vpop.f32.mrb[0].mxu0
  %v697 = vadd.f32 %v649, %v696
  %v698 = vpop.f32.mrb[0].mxu0
  %v699 = vpop.f32.mrb[0].mxu0
  %v700 = vadd.f32 %v652, %v699
  %v701 = vpop.f32.mrb[0].mxu0
  %702 = vmatprep.mubr.bf16.mxu0 %v209
  %703 = vmatmul.mubr.bf16.gmra.mrb[0].mxu0 %v208
  %v704 = vpop.f32.mrb[0].mxu0
  %v705 = vadd.f32 %v657, %v704
  %v706 = vpop.f32.mrb[0].mxu0
  %v707 = vpop.f32.mrb[0].mxu0
  %v708 = vpop.f32.mrb[0].mxu0
  %709 = vdwg.mxu0
  %710 = vmatprep.subr.bf16.mxu0 0
  %711 = vmatpush1.bf16.msra.mxu0 %v518
  %712 = vmatprep.subr.bf16.mxu0 0
  %713 = vmatpush1.bf16.msra.mxu0 %v519
  %714 = vmatprep.subr.bf16.mxu0 0
  %715 = vmatpush1.bf16.msra.mxu0 %v520
  %716 = vmatprep.subr.bf16.mxu0 0
  %717 = vmatpush1.bf16.msra.mxu0 %v521
  %718 = vmatprep.subr.bf16.mxu0 0
  %719 = vmatpush1.bf16.msra.mxu0 %v522
  %720 = vmatprep.subr.bf16.mxu0 0
  %721 = vmatpush1.bf16.msra.mxu0 %v523
  %722 = vmatprep.subr.bf16.mxu0 0
  %723 = vmatpush1.bf16.msra.mxu0 %v524
  %724 = vmatprep.subr.bf16.mxu0 0
  %725 = vmatpush1.bf16.msra.mxu0 %v525
  %726 = vmatprep.subr.bf16.mxu0 0
  %727 = vmatpush1.bf16.msra.mxu0 %v526
  %728 = vmatprep.subr.bf16.mxu0 0
  %729 = vmatpush1.bf16.msra.mxu0 %v527
  %730 = vmatprep.subr.bf16.mxu0 0
  %731 = vmatpush1.bf16.msra.mxu0 %v528
  %732 = vmatprep.subr.bf16.mxu0 0
  %733 = vmatpush1.bf16.msra.mxu0 %v529
  %734 = vmatprep.subr.bf16.mxu0 0
  %735 = vmatpush1.bf16.msra.mxu0 %v530
  %736 = vmatprep.subr.bf16.mxu0 0
  %737 = vmatpush1.bf16.msra.mxu0 %v531
  %738 = vmatprep.subr.bf16.mxu0 0
  %739 = vmatpush1.bf16.msra.mxu0 %v532
  %740 = vmatprep.subr.bf16.mxu0 0
  %741 = vmatpush1.bf16.msra.mxu0 %v533
  %742 = vmatprep.mubr.bf16.mxu0 %v203
  %743 = vmatmul.mubr.bf16.gmra.mrb[0].mxu0 %v202
  %v744 = vpop.f32.mrb[0].mxu0
  %v745 = vadd.f32 %v697, %v744
  %v746 = vpop.f32.mrb[0].mxu0
  %v747 = vpop.f32.mrb[0].mxu0
  %v748 = vadd.f32 %v700, %v747
  %v749 = vpop.f32.mrb[0].mxu0
  %750 = vmatprep.mubr.bf16.mxu0 %v211
  %751 = vmatmul.mubr.bf16.gmra.mrb[0].mxu0 %v210
  %v752 = vpop.f32.mrb[0].mxu0
  %v753 = vadd.f32 %v705, %v752
  %v754 = vpop.f32.mrb[0].mxu0
  %v755 = vpop.f32.mrb[0].mxu0
  %v756 = vpop.f32.mrb[0].mxu0
  %757 = vdwg.mxu0
  %758 = vmatprep.subr.bf16.mxu0 0
  %759 = vmatpush1.bf16.msra.mxu0 %v534
  %760 = vmatprep.subr.bf16.mxu0 0
  %761 = vmatpush1.bf16.msra.mxu0 %v535
  %762 = vmatprep.subr.bf16.mxu0 0
  %763 = vmatpush1.bf16.msra.mxu0 %v536
  %764 = vmatprep.subr.bf16.mxu0 0
  %765 = vmatpush1.bf16.msra.mxu0 %v537
  %766 = vmatprep.subr.bf16.mxu0 0
  %767 = vmatpush1.bf16.msra.mxu0 %v538
  %768 = vmatprep.subr.bf16.mxu0 0
  %769 = vmatpush1.bf16.msra.mxu0 %v539
  %770 = vmatprep.subr.bf16.mxu0 0
  %771 = vmatpush1.bf16.msra.mxu0 %v540
  %772 = vmatprep.subr.bf16.mxu0 0
  %773 = vmatpush1.bf16.msra.mxu0 %v541
  %774 = vmatprep.subr.bf16.mxu0 0
  %775 = vmatpush1.bf16.msra.mxu0 %v542
  %776 = vmatprep.subr.bf16.mxu0 0
  %777 = vmatpush1.bf16.msra.mxu0 %v543
  %778 = vmatprep.subr.bf16.mxu0 0
  %779 = vmatpush1.bf16.msra.mxu0 %v544
  %780 = vmatprep.subr.bf16.mxu0 0
  %781 = vmatpush1.bf16.msra.mxu0 %v545
  %782 = vmatprep.subr.bf16.mxu0 0
  %783 = vmatpush1.bf16.msra.mxu0 %v546
  %784 = vmatprep.subr.bf16.mxu0 0
  %785 = vmatpush1.bf16.msra.mxu0 %v547
  %786 = vmatprep.subr.bf16.mxu0 0
  %787 = vmatpush1.bf16.msra.mxu0 %v548
  %788 = vmatprep.subr.bf16.mxu0 0
  %789 = vmatpush1.bf16.msra.mxu0 %v549
  %790 = vmatprep.mubr.bf16.mxu0 %v205
  %791 = vmatmul.mubr.bf16.gmra.mrb[0].mxu0 %v204
  %v792 = vpop.f32.mrb[0].mxu0
  %v793 = vadd.f32 %v745, %v792
  %v794 = vpop.f32.mrb[0].mxu0
  %v795 = vpop.f32.mrb[0].mxu0
  %v796 = vadd.f32 %v748, %v795
  %v797 = vpop.f32.mrb[0].mxu0
  %798 = vmatprep.mubr.bf16.mxu0 %v213
  %799 = vmatmul.mubr.bf16.gmra.mrb[0].mxu0 %v212
  %v800 = vpop.f32.mrb[0].mxu0
  %v801 = vadd.f32 %v753, %v800
  %v802 = vpop.f32.mrb[0].mxu0
  %v803 = vpop.f32.mrb[0].mxu0
  %v804 = vpop.f32.mrb[0].mxu0
  %805 = vdwg.mxu0
  %vm806 = vcmp.ge.f32.partialorder %v793, 0.0
  %vm807 = vcmp.ge.f32.partialorder %v796, 0.0
  %vm808 = vcmp.ge.f32.partialorder %v801, 0.0
  %v809 = vmul.f32 %v793, 0.01
  %v810 = vmul.f32 %v796, 0.01
  %v811 = vmul.f32 %v801, 0.01
  %v812 = vsel %vm806, %v793, %v809
  %v813 = vsel %vm807, %v796, %v810
  %v814 = vsel %vm808, %v801, %v811
  %v815 = vpack.c.bf16 %v813, %v812
  %v816 = vpack.c.bf16 %v814, %v814
  %v819 = vunpack.c.l.b16 %v815
  %v820 = vunpack.c.h.b16 %v815
  %v821 = vunpack.c.l.b16 %v816
  %v822 = vpack.c.b16 %v819, %v819
  %v823 = vpack.c.b16 %v820, %v820
  %v824 = vpack.c.b16 %v821, %v821
  %828 = vst [vmem:[%s3] sm:$0xf] %v822
  %829 = vst [vmem:[%s3 + $0x4] sm:$0xf] %v823
  %830 = vst [vmem:[%s3 + $0x8] sm:$0x1] %v824
  // Predicated region
  $region14: #{cnn_base_forward.4} parent=0 // pred_check
    _
  $region15: #{cnn_base_forward.4} parent=0 // pred_check_branch
    %832 = sbr.rel (0) target = $region17
  $region16: #{cnn_base_forward.4} parent=0 // pred_region
    _
  $region17: #{cnn_base_forward.4} parent=0 // pred_fallthru
    _
  // Predicated region
  $region18: #{cnn_base_forward.4} parent=0 // pred_check
    _
  $region19: #{cnn_base_forward.4} parent=0 // pred_check_branch
    %834 = sbr.rel (0) target = $region21
  $region20: #{cnn_base_forward.4} parent=0 // pred_region
    _
  $region21: #{cnn_base_forward.4} parent=0 // pred_fallthru
    _

// kernel: cnn_base_forward.5
$region0: #{cnn_base_forward.5}
  #allocation0 [shape = 'u32[]', space=smem, size = 0x4, offset = 0x4, fixed_abs, tag = 'smem constant byte address 0x4 - core index']
  #allocation1 [shape = 'u32[144,128]{1,0:T(1,128)}', space=vmem, size = 0x12000, scoped, tag = 'internal scratch']
  #allocation2 [shape = 'f32[1,1]{1,0:T(1,128)S(1)}', space=vmem, size = 0x200, scoped, tag = 'scoped memory for cnn_base_forward.5']
  %s0 = inlined_call_operand.vmem [shape: bf16[2,1152], index: 0, kind: input, shape index: {}]
  %s1 = inlined_call_operand.vmem [shape: bf16[1152,64], index: 1, kind: input, shape index: {}]
  %s2 = inlined_call_operand.vmem [shape: f32[1,64], index: 2, kind: input, shape index: {}]
  %s3 = inlined_call_operand.vmem [shape: bf16[64,256], index: 3, kind: input, shape index: {}]
  %s4 = inlined_call_operand.vmem [shape: f32[1,256], index: 4, kind: input, shape index: {}]
  %s5 = inlined_call_operand.vmem [shape: bf16[128,128], index: 5, kind: input, shape index: {}]
  %s6 = inlined_call_operand.vmem [shape: f32[1,128], index: 6, kind: input, shape index: {}]
  %s7 = inlined_call_operand.vmem [shape: f32[1,128], index: 7, kind: input, shape index: {}]
  %s8 = inlined_call_operand.<no memory space> [shape: f32[1,1], index: 8, kind: input, shape index: {}]
  %s9 = inlined_call_operand.hbm [shape: f32[2,128], index: 9, kind: output, shape index: {0}]
  %s10 = inlined_call_operand.vmem [shape: f32[2,1], index: 10, kind: output, shape index: {1}]
  %11 = xla_tuple %s9, %s10
  %s12 = sld [smem:[#allocation0]]
  $region54: #{cnn_base_forward.5} parent=0
    _
  %s14 = ssub.s32 1, %s12
  %s15 = scalar_select 0, %s14, %s12
  %v16 = vstv %s8
  %17 = vst [vmem:[#allocation2] sm:$0x1] %v16
  $region1: #{cnn_base_forward.5} parent=0
    #allocation3 [shape = 'u8[1024]{0}', space=vmem, size = 0x400, scoped, tag = 'output window, operand 0, single buffered']
    #allocation4 [shape = 's32[1]{0}', space=sflag, size = 0x4, scoped, tag = 'scoped memory for cnn_base_forward.5']
    %18 = vsyncpa [#allocation4], 0
    // Predicated region
    $region2: #{cnn_base_forward.5} parent=1 // pred_check
      _
    $region3: #{cnn_base_forward.5} parent=1 // pred_check_branch
      %20 = sbr.rel (0) target = $region5
    $region4: #{cnn_base_forward.5} parent=1 // pred_region
      _
    $region5: #{cnn_base_forward.5} parent=1 // pred_fallthru
      _
    // Predicated region
    $region6: #{cnn_base_forward.5} parent=1 // pred_check
      _
    $region7: #{cnn_base_forward.5} parent=1 // pred_check_branch
      %22 = sbr.rel (0) target = $region9
    $region8: #{cnn_base_forward.5} parent=1 // pred_region
      _
    $region9: #{cnn_base_forward.5} parent=1 // pred_fallthru
      _
    // Predicated region
    $region10: #{cnn_base_forward.5} parent=1 // pred_check
      _
    $region11: #{cnn_base_forward.5} parent=1 // pred_check_branch
      %24 = sbr.rel (0) target = $region13
    $region12: #{cnn_base_forward.5} parent=1 // pred_region
      _
    $region13: #{cnn_base_forward.5} parent=1 // pred_fallthru
      _
    // Predicated region
    $region14: #{cnn_base_forward.5} parent=1 // pred_check
      _
    $region15: #{cnn_base_forward.5} parent=1 // pred_check_branch
      %26 = sbr.rel (0) target = $region17
    $region16: #{cnn_base_forward.5} parent=1 // pred_region
      _
    $region17: #{cnn_base_forward.5} parent=1 // pred_fallthru
      _
    // Predicated region
    $region18: #{cnn_base_forward.5} parent=1 // pred_check
      _
    $region19: #{cnn_base_forward.5} parent=1 // pred_check_branch
      %28 = sbr.rel (0) target = $region21
    $region20: #{cnn_base_forward.5} parent=1 // pred_region
      _
    $region21: #{cnn_base_forward.5} parent=1 // pred_fallthru
      _
    // Predicated region
    $region22: #{cnn_base_forward.5} parent=1 // pred_check
      _
    $region23: #{cnn_base_forward.5} parent=1 // pred_check_branch
      %30 = sbr.rel (0) target = $region25
    $region24: #{cnn_base_forward.5} parent=1 // pred_region
      _
    $region25: #{cnn_base_forward.5} parent=1 // pred_fallthru
      _
    // Predicated region
    $region26: #{cnn_base_forward.5} parent=1 // pred_check
      _
    $region27: #{cnn_base_forward.5} parent=1 // pred_check_branch
      %32 = sbr.rel (0) target = $region29
    $region28: #{cnn_base_forward.5} parent=1 // pred_region
      _
    $region29: #{cnn_base_forward.5} parent=1 // pred_fallthru
      _
    // Predicated region
    $region30: #{cnn_base_forward.5} parent=1 // pred_check
      _
    $region31: #{cnn_base_forward.5} parent=1 // pred_check_branch
      %34 = sbr.rel (0) target = $region33
    $region32: #{cnn_base_forward.5} parent=1 // pred_region
      _
    $region33: #{cnn_base_forward.5} parent=1 // pred_fallthru
      _
    // Predicated region
    $region34: #{cnn_base_forward.5} parent=1 // pred_check
      _
    $region35: #{cnn_base_forward.5} parent=1 // pred_check_branch
      %36 = sbr.rel (0) target = $region37
    $region36: #{cnn_base_forward.5} parent=1 // pred_region
      _
    $region37: #{cnn_base_forward.5} parent=1 // pred_fallthru
      _
    %v38 = vld [vmem:[%s0] sm:$0xff]
    %v39 = vld [vmem:[%s0 + $0x8] sm:$0x1]
    %v40 = vld [vmem:[%s1] sm:$0xf]
    %v41 = vld [vmem:[%s1 + $0x4] sm:$0xf]
    %v42 = vld [vmem:[%s1 + $0x8] sm:$0xf]
    %v43 = vld [vmem:[%s1 + $0xc] sm:$0xf]
    %v44 = vld [vmem:[%s1 + $0x10] sm:$0xf]
    %v45 = vld [vmem:[%s1 + $0x14] sm:$0xf]
    %v46 = vld [vmem:[%s1 + $0x18] sm:$0xf]
    %v47 = vld [vmem:[%s1 + $0x1c] sm:$0xf]
    %v48 = vld [vmem:[%s1 + $0x20] sm:$0xf]
    %v49 = vld [vmem:[%s1 + $0x24] sm:$0xf]
    %v50 = vld [vmem:[%s1 + $0x28] sm:$0xf]
    %v51 = vld [vmem:[%s1 + $0x2c] sm:$0xf]
    %v52 = vld [vmem:[%s1 + $0x30] sm:$0xf]
    %v53 = vld [vmem:[%s1 + $0x34] sm:$0xf]
    %v54 = vld [vmem:[%s1 + $0x38] sm:$0xf]
    %v55 = vld [vmem:[%s1 + $0x3c] sm:$0xf]
    %v56 = vld [vmem:[%s1 + $0x40] sm:$0xf]
    %v57 = vld [vmem:[%s1 + $0x44] sm:$0xf]
    %v58 = vld [vmem:[%s1 + $0x48] sm:$0xf]
    %v59 = vld [vmem:[%s1 + $0x4c] sm:$0xf]
    %v60 = vld [vmem:[%s1 + $0x50] sm:$0xf]
    %v61 = vld [vmem:[%s1 + $0x54] sm:$0xf]
    %v62 = vld [vmem:[%s1 + $0x58] sm:$0xf]
    %v63 = vld [vmem:[%s1 + $0x5c] sm:$0xf]
    %v64 = vld [vmem:[%s1 + $0x60] sm:$0xf]
    %v65 = vld [vmem:[%s1 + $0x64] sm:$0xf]
    %v66 = vld [vmem:[%s1 + $0x68] sm:$0xf]
    %v67 = vld [vmem:[%s1 + $0x6c] sm:$0xf]
    %v68 = vld [vmem:[%s1 + $0x70] sm:$0xf]
    %v69 = vld [vmem:[%s1 + $0x74] sm:$0xf]
    %v70 = vld [vmem:[%s1 + $0x78] sm:$0xf]
    %v71 = vld [vmem:[%s1 + $0x7c] sm:$0xf]
    %v72 = vld [vmem:[%s1 + $0x80] sm:$0xf]
    %v73 = vld [vmem:[%s1 + $0x84] sm:$0xf]
    %v74 = vld [vmem:[%s1 + $0x88] sm:$0xf]
    %v75 = vld [vmem:[%s1 + $0x8c] sm:$0xf]
    %v76 = vld [vmem:[%s1 + $0x90] sm:$0xf]
    %v77 = vld [vmem:[%s1 + $0x94] sm:$0xf]
    %v78 = vld [vmem:[%s1 + $0x98] sm:$0xf]
    %v79 = vld [vmem:[%s1 + $0x9c] sm:$0xf]
    %v80 = vld [vmem:[%s1 + $0xa0] sm:$0xf]
    %v81 = vld [vmem:[%s1 + $0xa4] sm:$0xf]
    %v82 = vld [vmem:[%s1 + $0xa8] sm:$0xf]
    %v83 = vld [vmem:[%s1 + $0xac] sm:$0xf]
    %v84 = vld [vmem:[%s1 + $0xb0] sm:$0xf]
    %v85 = vld [vmem:[%s1 + $0xb4] sm:$0xf]
    %v86 = vld [vmem:[%s1 + $0xb8] sm:$0xf]
    %v87 = vld [vmem:[%s1 + $0xbc] sm:$0xf]
    %v88 = vld [vmem:[%s1 + $0xc0] sm:$0xf]
    %v89 = vld [vmem:[%s1 + $0xc4] sm:$0xf]
    %v90 = vld [vmem:[%s1 + $0xc8] sm:$0xf]
    %v91 = vld [vmem:[%s1 + $0xcc] sm:$0xf]
    %v92 = vld [vmem:[%s1 + $0xd0] sm:$0xf]
    %v93 = vld [vmem:[%s1 + $0xd4] sm:$0xf]
    %v94 = vld [vmem:[%s1 + $0xd8] sm:$0xf]
    %v95 = vld [vmem:[%s1 + $0xdc] sm:$0xf]
    %v96 = vld [vmem:[%s1 + $0xe0] sm:$0xf]
    %v97 = vld [vmem:[%s1 + $0xe4] sm:$0xf]
    %v98 = vld [vmem:[%s1 + $0xe8] sm:$0xf]
    %v99 = vld [vmem:[%s1 + $0xec] sm:$0xf]
    %v100 = vld [vmem:[%s1 + $0xf0] sm:$0xf]
    %v101 = vld [vmem:[%s1 + $0xf4] sm:$0xf]
    %v102 = vld [vmem:[%s1 + $0xf8] sm:$0xf]
    %v103 = vld [vmem:[%s1 + $0xfc] sm:$0xf]
    %v104 = vld [vmem:[%s1 + $0x100] sm:$0xf]
    %v105 = vld [vmem:[%s1 + $0x104] sm:$0xf]
    %v106 = vld [vmem:[%s1 + $0x108] sm:$0xf]
    %v107 = vld [vmem:[%s1 + $0x10c] sm:$0xf]
    %v108 = vld [vmem:[%s1 + $0x110] sm:$0xf]
    %v109 = vld [vmem:[%s1 + $0x114] sm:$0xf]
    %v110 = vld [vmem:[%s1 + $0x118] sm:$0xf]
    %v111 = vld [vmem:[%s1 + $0x11c] sm:$0xf]
    %v112 = vld [vmem:[%s1 + $0x120] sm:$0xf]
    %v113 = vld [vmem:[%s1 + $0x124] sm:$0xf]
    %v114 = vld [vmem:[%s1 + $0x128] sm:$0xf]
    %v115 = vld [vmem:[%s1 + $0x12c] sm:$0xf]
    %v116 = vld [vmem:[%s1 + $0x130] sm:$0xf]
    %v117 = vld [vmem:[%s1 + $0x134] sm:$0xf]
    %v118 = vld [vmem:[%s1 + $0x138] sm:$0xf]
    %v119 = vld [vmem:[%s1 + $0x13c] sm:$0xf]
    %v120 = vld [vmem:[%s1 + $0x140] sm:$0xf]
    %v121 = vld [vmem:[%s1 + $0x144] sm:$0xf]
    %v122 = vld [vmem:[%s1 + $0x148] sm:$0xf]
    %v123 = vld [vmem:[%s1 + $0x14c] sm:$0xf]
    %v124 = vld [vmem:[%s1 + $0x150] sm:$0xf]
    %v125 = vld [vmem:[%s1 + $0x154] sm:$0xf]
    %v126 = vld [vmem:[%s1 + $0x158] sm:$0xf]
    %v127 = vld [vmem:[%s1 + $0x15c] sm:$0xf]
    %v128 = vld [vmem:[%s1 + $0x160] sm:$0xf]
    %v129 = vld [vmem:[%s1 + $0x164] sm:$0xf]
    %v130 = vld [vmem:[%s1 + $0x168] sm:$0xf]
    %v131 = vld [vmem:[%s1 + $0x16c] sm:$0xf]
    %v132 = vld [vmem:[%s1 + $0x170] sm:$0xf]
    %v133 = vld [vmem:[%s1 + $0x174] sm:$0xf]
    %v134 = vld [vmem:[%s1 + $0x178] sm:$0xf]
    %v135 = vld [vmem:[%s1 + $0x17c] sm:$0xf]
    %v136 = vld [vmem:[%s1 + $0x180] sm:$0xf]
    %v137 = vld [vmem:[%s1 + $0x184] sm:$0xf]
    %v138 = vld [vmem:[%s1 + $0x188] sm:$0xf]
    %v139 = vld [vmem:[%s1 + $0x18c] sm:$0xf]
    %v140 = vld [vmem:[%s1 + $0x190] sm:$0xf]
    %v141 = vld [vmem:[%s1 + $0x194] sm:$0xf]
    %v142 = vld [vmem:[%s1 + $0x198] sm:$0xf]
    %v143 = vld [vmem:[%s1 + $0x19c] sm:$0xf]
    %v144 = vld [vmem:[%s1 + $0x1a0] sm:$0xf]
    %v145 = vld [vmem:[%s1 + $0x1a4] sm:$0xf]
    %v146 = vld [vmem:[%s1 + $0x1a8] sm:$0xf]
    %v147 = vld [vmem:[%s1 + $0x1ac] sm:$0xf]
    %v148 = vld [vmem:[%s1 + $0x1b0] sm:$0xf]
    %v149 = vld [vmem:[%s1 + $0x1b4] sm:$0xf]
    %v150 = vld [vmem:[%s1 + $0x1b8] sm:$0xf]
    %v151 = vld [vmem:[%s1 + $0x1bc] sm:$0xf]
    %v152 = vld [vmem:[%s1 + $0x1c0] sm:$0xf]
    %v153 = vld [vmem:[%s1 + $0x1c4] sm:$0xf]
    %v154 = vld [vmem:[%s1 + $0x1c8] sm:$0xf]
    %v155 = vld [vmem:[%s1 + $0x1cc] sm:$0xf]
    %v156 = vld [vmem:[%s1 + $0x1d0] sm:$0xf]
    %v157 = vld [vmem:[%s1 + $0x1d4] sm:$0xf]
    %v158 = vld [vmem:[%s1 + $0x1d8] sm:$0xf]
    %v159 = vld [vmem:[%s1 + $0x1dc] sm:$0xf]
    %v160 = vld [vmem:[%s1 + $0x1e0] sm:$0xf]
    %v161 = vld [vmem:[%s1 + $0x1e4] sm:$0xf]
    %v162 = vld [vmem:[%s1 + $0x1e8] sm:$0xf]
    %v163 = vld [vmem:[%s1 + $0x1ec] sm:$0xf]
    %v164 = vld [vmem:[%s1 + $0x1f0] sm:$0xf]
    %v165 = vld [vmem:[%s1 + $0x1f4] sm:$0xf]
    %v166 = vld [vmem:[%s1 + $0x1f8] sm:$0xf]
    %v167 = vld [vmem:[%s1 + $0x1fc] sm:$0xf]
    %v168 = vld [vmem:[%s1 + $0x200] sm:$0xf]
    %v169 = vld [vmem:[%s1 + $0x204] sm:$0xf]
    %v170 = vld [vmem:[%s1 + $0x208] sm:$0xf]
    %v171 = vld [vmem:[%s1 + $0x20c] sm:$0xf]
    %v172 = vld [vmem:[%s1 + $0x210] sm:$0xf]
    %v173 = vld [vmem:[%s1 + $0x214] sm:$0xf]
    %v174 = vld [vmem:[%s1 + $0x218] sm:$0xf]
    %v175 = vld [vmem:[%s1 + $0x21c] sm:$0xf]
    %v176 = vld [vmem:[%s1 + $0x220] sm:$0xf]
    %v177 = vld [vmem:[%s1 + $0x224] sm:$0xf]
    %v178 = vld [vmem:[%s1 + $0x228] sm:$0xf]
    %v179 = vld [vmem:[%s1 + $0x22c] sm:$0xf]
    %v180 = vld [vmem:[%s1 + $0x230] sm:$0xf]
    %v181 = vld [vmem:[%s1 + $0x234] sm:$0xf]
    %v182 = vld [vmem:[%s1 + $0x238] sm:$0xf]
    %v183 = vld [vmem:[%s1 + $0x23c] sm:$0xf]
    %v184 = vld [vmem:[%s2] sm:$0x1]
    %v186 = vlaneseq
    %v187 = vshrl.u32 %v186, 7
    %v188 = vsub.s32 0, %v187
    %v189 = vrot.slane %v184, %v188
    %v193 = vcombine.high %v38, %v38
    %v195 = vunpack.c.l.s4 1966171168
    %v196 = vunpack.c.0.s8 %v195
    %v197 = vlaneseq
    %v198 = vshrl.u32 %v197, 7
    %v199 = vsub.s32 %v196, %v198
    %v200 = vrot.slane %v38, %v199
    %v202 = vunpack.c.l.s4 1966171168
    %v203 = vunpack.c.0.s8 %v202
    %v204 = vlaneseq
    %v205 = vshrl.u32 %v204, 7
    %v206 = vsub.s32 %v203, %v205
    %v207 = vrot.slane %v193, %v206
    %v208 = vcombine.high %v200, %v200
    %v209 = vcombine.high %v207, %v207
    %v211 = vunpack.c.l.s4 1966171168
    %v212 = vunpack.c.0.s8 %v211
    %v213 = vlaneseq
    %v214 = vshrl.u32 %v213, 7
    %v215 = vsub.s32 %v212, %v214
    %v216 = vrot.slane %v200, %v215
    %v218 = vunpack.c.l.s4 1966171168
    %v219 = vunpack.c.0.s8 %v218
    %v220 = vlaneseq
    %v221 = vshrl.u32 %v220, 7
    %v222 = vsub.s32 %v219, %v221
    %v223 = vrot.slane %v207, %v222
    %v225 = vunpack.c.l.s4 1966171168
    %v226 = vunpack.c.0.s8 %v225
    %v227 = vlaneseq
    %v228 = vshrl.u32 %v227, 7
    %v229 = vsub.s32 %v226, %v228
    %v230 = vrot.slane %v208, %v229
    %v232 = vunpack.c.l.s4 1966171168
    %v233 = vunpack.c.0.s8 %v232
    %v234 = vlaneseq
    %v235 = vshrl.u32 %v234, 7
    %v236 = vsub.s32 %v233, %v235
    %v237 = vrot.slane %v209, %v236
    %v238 = vcombine.high %v216, %v216
    %v239 = vcombine.high %v223, %v223
    %v240 = vcombine.high %v230, %v230
    %v241 = vcombine.high %v237, %v237
    %v243 = vunpack.c.l.s4 1966171168
    %v244 = vunpack.c.0.s8 %v243
    %v245 = vlaneseq
    %v246 = vshrl.u32 %v245, 7
    %v247 = vsub.s32 %v244, %v246
    %v248 = vrot.slane %v39, %v247
    %v250 = vunpack.c.l.s4 1966171168
    %v251 = vunpack.c.0.s8 %v250
    %v252 = vlaneseq
    %v253 = vshrl.u32 %v252, 7
    %v254 = vsub.s32 %v251, %v253
    %v255 = vrot.slane %v248, %v254
    %v409 = vunpack.c.l.b16 %v40
    %v410 = vunpack.c.l.b16 %v41
    %v411 = vunpack.c.l.b16 %v42
    %v412 = vunpack.c.l.b16 %v43
    %v413 = vunpack.c.l.b16 %v44
    %v414 = vunpack.c.l.b16 %v45
    %v415 = vunpack.c.l.b16 %v46
    %v416 = vunpack.c.l.b16 %v47
    %v417 = vunpack.c.l.b16 %v48
    %v418 = vunpack.c.l.b16 %v49
    %v419 = vunpack.c.l.b16 %v50
    %v420 = vunpack.c.l.b16 %v51
    %v421 = vunpack.c.l.b16 %v52
    %v422 = vunpack.c.l.b16 %v53
    %v423 = vunpack.c.l.b16 %v54
    %v424 = vunpack.c.l.b16 %v55
    %v425 = vunpack.c.l.b16 %v56
    %v426 = vunpack.c.l.b16 %v57
    %v427 = vunpack.c.l.b16 %v58
    %v428 = vunpack.c.l.b16 %v59
    %v429 = vunpack.c.l.b16 %v60
    %v430 = vunpack.c.l.b16 %v61
    %v431 = vunpack.c.l.b16 %v62
    %v432 = vunpack.c.l.b16 %v63
    %v433 = vunpack.c.l.b16 %v64
    %v434 = vunpack.c.l.b16 %v65
    %v435 = vunpack.c.l.b16 %v66
    %v436 = vunpack.c.l.b16 %v67
    %v437 = vunpack.c.l.b16 %v68
    %v438 = vunpack.c.l.b16 %v69
    %v439 = vunpack.c.l.b16 %v70
    %v440 = vunpack.c.l.b16 %v71
    %v441 = vunpack.c.l.b16 %v72
    %v442 = vunpack.c.l.b16 %v73
    %v443 = vunpack.c.l.b16 %v74
    %v444 = vunpack.c.l.b16 %v75
    %v445 = vunpack.c.l.b16 %v76
    %v446 = vunpack.c.l.b16 %v77
    %v447 = vunpack.c.l.b16 %v78
    %v448 = vunpack.c.l.b16 %v79
    %v449 = vunpack.c.l.b16 %v80
    %v450 = vunpack.c.l.b16 %v81
    %v451 = vunpack.c.l.b16 %v82
    %v452 = vunpack.c.l.b16 %v83
    %v453 = vunpack.c.l.b16 %v84
    %v454 = vunpack.c.l.b16 %v85
    %v455 = vunpack.c.l.b16 %v86
    %v456 = vunpack.c.l.b16 %v87
    %v457 = vunpack.c.l.b16 %v88
    %v458 = vunpack.c.l.b16 %v89
    %v459 = vunpack.c.l.b16 %v90
    %v460 = vunpack.c.l.b16 %v91
    %v461 = vunpack.c.l.b16 %v92
    %v462 = vunpack.c.l.b16 %v93
    %v463 = vunpack.c.l.b16 %v94
    %v464 = vunpack.c.l.b16 %v95
    %v465 = vunpack.c.l.b16 %v96
    %v466 = vunpack.c.l.b16 %v97
    %v467 = vunpack.c.l.b16 %v98
    %v468 = vunpack.c.l.b16 %v99
    %v469 = vunpack.c.l.b16 %v100
    %v470 = vunpack.c.l.b16 %v101
    %v471 = vunpack.c.l.b16 %v102
    %v472 = vunpack.c.l.b16 %v103
    %v473 = vunpack.c.l.b16 %v104
    %v474 = vunpack.c.l.b16 %v105
    %v475 = vunpack.c.l.b16 %v106
    %v476 = vunpack.c.l.b16 %v107
    %v477 = vunpack.c.l.b16 %v108
    %v478 = vunpack.c.l.b16 %v109
    %v479 = vunpack.c.l.b16 %v110
    %v480 = vunpack.c.l.b16 %v111
    %v481 = vunpack.c.l.b16 %v112
    %v482 = vunpack.c.l.b16 %v113
    %v483 = vunpack.c.l.b16 %v114
    %v484 = vunpack.c.l.b16 %v115
    %v485 = vunpack.c.l.b16 %v116
    %v486 = vunpack.c.l.b16 %v117
    %v487 = vunpack.c.l.b16 %v118
    %v488 = vunpack.c.l.b16 %v119
    %v489 = vunpack.c.l.b16 %v120
    %v490 = vunpack.c.l.b16 %v121
    %v491 = vunpack.c.l.b16 %v122
    %v492 = vunpack.c.l.b16 %v123
    %v493 = vunpack.c.l.b16 %v124
    %v494 = vunpack.c.l.b16 %v125
    %v495 = vunpack.c.l.b16 %v126
    %v496 = vunpack.c.l.b16 %v127
    %v497 = vunpack.c.l.b16 %v128
    %v498 = vunpack.c.l.b16 %v129
    %v499 = vunpack.c.l.b16 %v130
    %v500 = vunpack.c.l.b16 %v131
    %v501 = vunpack.c.l.b16 %v132
    %v502 = vunpack.c.l.b16 %v133
    %v503 = vunpack.c.l.b16 %v134
    %v504 = vunpack.c.l.b16 %v135
    %v505 = vunpack.c.l.b16 %v136
    %v506 = vunpack.c.l.b16 %v137
    %v507 = vunpack.c.l.b16 %v138
    %v508 = vunpack.c.l.b16 %v139
    %v509 = vunpack.c.l.b16 %v140
    %v510 = vunpack.c.l.b16 %v141
    %v511 = vunpack.c.l.b16 %v142
    %v512 = vunpack.c.l.b16 %v143
    %v513 = vunpack.c.l.b16 %v144
    %v514 = vunpack.c.l.b16 %v145
    %v515 = vunpack.c.l.b16 %v146
    %v516 = vunpack.c.l.b16 %v147
    %v517 = vunpack.c.l.b16 %v148
    %v518 = vunpack.c.l.b16 %v149
    %v519 = vunpack.c.l.b16 %v150
    %v520 = vunpack.c.l.b16 %v151
    %v521 = vunpack.c.l.b16 %v152
    %v522 = vunpack.c.l.b16 %v153
    %v523 = vunpack.c.l.b16 %v154
    %v524 = vunpack.c.l.b16 %v155
    %v525 = vunpack.c.l.b16 %v156
    %v526 = vunpack.c.l.b16 %v157
    %v527 = vunpack.c.l.b16 %v158
    %v528 = vunpack.c.l.b16 %v159
    %v529 = vunpack.c.l.b16 %v160
    %v530 = vunpack.c.l.b16 %v161
    %v531 = vunpack.c.l.b16 %v162
    %v532 = vunpack.c.l.b16 %v163
    %v533 = vunpack.c.l.b16 %v164
    %v534 = vunpack.c.l.b16 %v165
    %v535 = vunpack.c.l.b16 %v166
    %v536 = vunpack.c.l.b16 %v167
    %v537 = vunpack.c.l.b16 %v168
    %v538 = vunpack.c.l.b16 %v169
    %v539 = vunpack.c.l.b16 %v170
    %v540 = vunpack.c.l.b16 %v171
    %v541 = vunpack.c.l.b16 %v172
    %v542 = vunpack.c.l.b16 %v173
    %v543 = vunpack.c.l.b16 %v174
    %v544 = vunpack.c.l.b16 %v175
    %v545 = vunpack.c.l.b16 %v176
    %v546 = vunpack.c.l.b16 %v177
    %v547 = vunpack.c.l.b16 %v178
    %v548 = vunpack.c.l.b16 %v179
    %v549 = vunpack.c.l.b16 %v180
    %v550 = vunpack.c.l.b16 %v181
    %v551 = vunpack.c.l.b16 %v182
    %v552 = vunpack.c.l.b16 %v183
    %v553 = vpack.c.b16 %v410, %v409
    %v554 = vpack.c.b16 %v412, %v411
    %v555 = vpack.c.b16 %v414, %v413
    %v556 = vpack.c.b16 %v416, %v415
    %v557 = vpack.c.b16 %v418, %v417
    %v558 = vpack.c.b16 %v420, %v419
    %v559 = vpack.c.b16 %v422, %v421
    %v560 = vpack.c.b16 %v424, %v423
    %v561 = vpack.c.b16 %v426, %v425
    %v562 = vpack.c.b16 %v428, %v427
    %v563 = vpack.c.b16 %v430, %v429
    %v564 = vpack.c.b16 %v432, %v431
    %v565 = vpack.c.b16 %v434, %v433
    %v566 = vpack.c.b16 %v436, %v435
    %v567 = vpack.c.b16 %v438, %v437
    %v568 = vpack.c.b16 %v440, %v439
    %v569 = vpack.c.b16 %v442, %v441
    %v570 = vpack.c.b16 %v444, %v443
    %v571 = vpack.c.b16 %v446, %v445
    %v572 = vpack.c.b16 %v448, %v447
    %v573 = vpack.c.b16 %v450, %v449
    %v574 = vpack.c.b16 %v452, %v451
    %v575 = vpack.c.b16 %v454, %v453
    %v576 = vpack.c.b16 %v456, %v455
    %v577 = vpack.c.b16 %v458, %v457
    %v578 = vpack.c.b16 %v460, %v459
    %v579 = vpack.c.b16 %v462, %v461
    %v580 = vpack.c.b16 %v464, %v463
    %v581 = vpack.c.b16 %v466, %v465
    %v582 = vpack.c.b16 %v468, %v467
    %v583 = vpack.c.b16 %v470, %v469
    %v584 = vpack.c.b16 %v472, %v471
    %v585 = vpack.c.b16 %v474, %v473
    %v586 = vpack.c.b16 %v476, %v475
    %v587 = vpack.c.b16 %v478, %v477
    %v588 = vpack.c.b16 %v480, %v479
    %v589 = vpack.c.b16 %v482, %v481
    %v590 = vpack.c.b16 %v484, %v483
    %v591 = vpack.c.b16 %v486, %v485
    %v592 = vpack.c.b16 %v488, %v487
    %v593 = vpack.c.b16 %v490, %v489
    %v594 = vpack.c.b16 %v492, %v491
    %v595 = vpack.c.b16 %v494, %v493
    %v596 = vpack.c.b16 %v496, %v495
    %v597 = vpack.c.b16 %v498, %v497
    %v598 = vpack.c.b16 %v500, %v499
    %v599 = vpack.c.b16 %v502, %v501
    %v600 = vpack.c.b16 %v504, %v503
    %v601 = vpack.c.b16 %v506, %v505
    %v602 = vpack.c.b16 %v508, %v507
    %v603 = vpack.c.b16 %v510, %v509
    %v604 = vpack.c.b16 %v512, %v511
    %v605 = vpack.c.b16 %v514, %v513
    %v606 = vpack.c.b16 %v516, %v515
    %v607 = vpack.c.b16 %v518, %v517
    %v608 = vpack.c.b16 %v520, %v519
    %v609 = vpack.c.b16 %v522, %v521
    %v610 = vpack.c.b16 %v524, %v523
    %v611 = vpack.c.b16 %v526, %v525
    %v612 = vpack.c.b16 %v528, %v527
    %v613 = vpack.c.b16 %v530, %v529
    %v614 = vpack.c.b16 %v532, %v531
    %v615 = vpack.c.b16 %v534, %v533
    %v616 = vpack.c.b16 %v536, %v535
    %v617 = vpack.c.b16 %v538, %v537
    %v618 = vpack.c.b16 %v540, %v539
    %v619 = vpack.c.b16 %v542, %v541
    %v620 = vpack.c.b16 %v544, %v543
    %v621 = vpack.c.b16 %v546, %v545
    %v622 = vpack.c.b16 %v548, %v547
    %v623 = vpack.c.b16 %v550, %v549
    %v624 = vpack.c.b16 %v552, %v551
    %697 = vmatprep.subr.bf16.mxu0 0
    %698 = vmatpush1.bf16.msra.mxu0 %v553
    %699 = vmatprep.subr.bf16.mxu0 0
    %700 = vmatpush1.bf16.msra.mxu0 %v554
    %701 = vmatprep.subr.bf16.mxu0 0
    %702 = vmatpush1.bf16.msra.mxu0 %v555
    %703 = vmatprep.subr.bf16.mxu0 0
    %704 = vmatpush1.bf16.msra.mxu0 %v556
    %705 = vmatprep.subr.bf16.mxu0 0
    %706 = vmatpush1.bf16.msra.mxu0 %v557
    %707 = vmatprep.subr.bf16.mxu0 0
    %708 = vmatpush1.bf16.msra.mxu0 %v558
    %709 = vmatprep.subr.bf16.mxu0 0
    %710 = vmatpush1.bf16.msra.mxu0 %v559
    %711 = vmatprep.subr.bf16.mxu0 0
    %712 = vmatpush1.bf16.msra.mxu0 %v560
    %713 = vmatprep.subr.bf16.mxu0 0
    %714 = vmatpush1.bf16.msra.mxu0 %v561
    %715 = vmatprep.subr.bf16.mxu0 0
    %716 = vmatpush1.bf16.msra.mxu0 %v562
    %717 = vmatprep.subr.bf16.mxu0 0
    %718 = vmatpush1.bf16.msra.mxu0 %v563
    %719 = vmatprep.subr.bf16.mxu0 0
    %720 = vmatpush1.bf16.msra.mxu0 %v564
    %721 = vmatprep.subr.bf16.mxu0 0
    %722 = vmatpush1.bf16.msra.mxu0 %v565
    %723 = vmatprep.subr.bf16.mxu0 0
    %724 = vmatpush1.bf16.msra.mxu0 %v566
    %725 = vmatprep.subr.bf16.mxu0 0
    %726 = vmatpush1.bf16.msra.mxu0 %v567
    %727 = vmatprep.subr.bf16.mxu0 0
    %728 = vmatpush1.bf16.msra.mxu0 %v568
    %729 = vmatprep.mubr.bf16.mxu0 %v230
    %730 = vmatmul.mubr.bf16.gmra.mrb[0].mxu0 %v216
    %v731 = vpop.f32.mrb[0].mxu0
    %v732 = vadd.f32 %v189, %v731
    %v733 = vpop.f32.mrb[0].mxu0
    %v734 = vpop.f32.mrb[0].mxu0
    %v735 = vpop.f32.mrb[0].mxu0
    %736 = vdwg.mxu0
    %737 = vmatprep.subr.bf16.mxu0 0
    %738 = vmatpush1.bf16.msra.mxu0 %v569
    %739 = vmatprep.subr.bf16.mxu0 0
    %740 = vmatpush1.bf16.msra.mxu0 %v570
    %741 = vmatprep.subr.bf16.mxu0 0
    %742 = vmatpush1.bf16.msra.mxu0 %v571
    %743 = vmatprep.subr.bf16.mxu0 0
    %744 = vmatpush1.bf16.msra.mxu0 %v572
    %745 = vmatprep.subr.bf16.mxu0 0
    %746 = vmatpush1.bf16.msra.mxu0 %v573
    %747 = vmatprep.subr.bf16.mxu0 0
    %748 = vmatpush1.bf16.msra.mxu0 %v574
    %749 = vmatprep.subr.bf16.mxu0 0
    %750 = vmatpush1.bf16.msra.mxu0 %v575
    %751 = vmatprep.subr.bf16.mxu0 0
    %752 = vmatpush1.bf16.msra.mxu0 %v576
    %753 = vmatprep.subr.bf16.mxu0 0
    %754 = vmatpush1.bf16.msra.mxu0 %v577
    %755 = vmatprep.subr.bf16.mxu0 0
    %756 = vmatpush1.bf16.msra.mxu0 %v578
    %757 = vmatprep.subr.bf16.mxu0 0
    %758 = vmatpush1.bf16.msra.mxu0 %v579
    %759 = vmatprep.subr.bf16.mxu0 0
    %760 = vmatpush1.bf16.msra.mxu0 %v580
    %761 = vmatprep.subr.bf16.mxu0 0
    %762 = vmatpush1.bf16.msra.mxu0 %v581
    %763 = vmatprep.subr.bf16.mxu0 0
    %764 = vmatpush1.bf16.msra.mxu0 %v582
    %765 = vmatprep.subr.bf16.mxu0 0
    %766 = vmatpush1.bf16.msra.mxu0 %v583
    %767 = vmatprep.subr.bf16.mxu0 0
    %768 = vmatpush1.bf16.msra.mxu0 %v584
    %769 = vmatprep.mubr.bf16.mxu0 %v240
    %770 = vmatmul.mubr.bf16.gmra.mrb[0].mxu0 %v238
    %v771 = vpop.f32.mrb[0].mxu0
    %v772 = vadd.f32 %v732, %v771
    %v773 = vpop.f32.mrb[0].mxu0
    %v774 = vpop.f32.mrb[0].mxu0
    %v775 = vpop.f32.mrb[0].mxu0
    %776 = vdwg.mxu0
    %777 = vmatprep.subr.bf16.mxu0 0
    %778 = vmatpush1.bf16.msra.mxu0 %v585
    %779 = vmatprep.subr.bf16.mxu0 0
    %780 = vmatpush1.bf16.msra.mxu0 %v586
    %781 = vmatprep.subr.bf16.mxu0 0
    %782 = vmatpush1.bf16.msra.mxu0 %v587
    %783 = vmatprep.subr.bf16.mxu0 0
    %784 = vmatpush1.bf16.msra.mxu0 %v588
    %785 = vmatprep.subr.bf16.mxu0 0
    %786 = vmatpush1.bf16.msra.mxu0 %v589
    %787 = vmatprep.subr.bf16.mxu0 0
    %788 = vmatpush1.bf16.msra.mxu0 %v590
    %789 = vmatprep.subr.bf16.mxu0 0
    %790 = vmatpush1.bf16.msra.mxu0 %v591
    %791 = vmatprep.subr.bf16.mxu0 0
    %792 = vmatpush1.bf16.msra.mxu0 %v592
    %793 = vmatprep.subr.bf16.mxu0 0
    %794 = vmatpush1.bf16.msra.mxu0 %v593
    %795 = vmatprep.subr.bf16.mxu0 0
    %796 = vmatpush1.bf16.msra.mxu0 %v594
    %797 = vmatprep.subr.bf16.mxu0 0
    %798 = vmatpush1.bf16.msra.mxu0 %v595
    %799 = vmatprep.subr.bf16.mxu0 0
    %800 = vmatpush1.bf16.msra.mxu0 %v596
    %801 = vmatprep.subr.bf16.mxu0 0
    %802 = vmatpush1.bf16.msra.mxu0 %v597
    %803 = vmatprep.subr.bf16.mxu0 0
    %804 = vmatpush1.bf16.msra.mxu0 %v598
    %805 = vmatprep.subr.bf16.mxu0 0
    %806 = vmatpush1.bf16.msra.mxu0 %v599
    %807 = vmatprep.subr.bf16.mxu0 0
    %808 = vmatpush1.bf16.msra.mxu0 %v600
    %809 = vmatprep.mubr.bf16.mxu0 %v237
    %810 = vmatmul.mubr.bf16.gmra.mrb[0].mxu0 %v223
    %v811 = vpop.f32.mrb[0].mxu0
    %v812 = vadd.f32 %v772, %v811
    %v813 = vpop.f32.mrb[0].mxu0
    %v814 = vpop.f32.mrb[0].mxu0
    %v815 = vpop.f32.mrb[0].mxu0
    %816 = vdwg.mxu0
    %817 = vmatprep.subr.bf16.mxu0 0
    %818 = vmatpush1.bf16.msra.mxu0 %v601
    %819 = vmatprep.subr.bf16.mxu0 0
    %820 = vmatpush1.bf16.msra.mxu0 %v602
    %821 = vmatprep.subr.bf16.mxu0 0
    %822 = vmatpush1.bf16.msra.mxu0 %v603
    %823 = vmatprep.subr.bf16.mxu0 0
    %824 = vmatpush1.bf16.msra.mxu0 %v604
    %825 = vmatprep.subr.bf16.mxu0 0
    %826 = vmatpush1.bf16.msra.mxu0 %v605
    %827 = vmatprep.subr.bf16.mxu0 0
    %828 = vmatpush1.bf16.msra.mxu0 %v606
    %829 = vmatprep.subr.bf16.mxu0 0
    %830 = vmatpush1.bf16.msra.mxu0 %v607
    %831 = vmatprep.subr.bf16.mxu0 0
    %832 = vmatpush1.bf16.msra.mxu0 %v608
    %833 = vmatprep.subr.bf16.mxu0 0
    %834 = vmatpush1.bf16.msra.mxu0 %v609
    %835 = vmatprep.subr.bf16.mxu0 0
    %836 = vmatpush1.bf16.msra.mxu0 %v610
    %837 = vmatprep.subr.bf16.mxu0 0
    %838 = vmatpush1.bf16.msra.mxu0 %v611
    %839 = vmatprep.subr.bf16.mxu0 0
    %840 = vmatpush1.bf16.msra.mxu0 %v612
    %841 = vmatprep.subr.bf16.mxu0 0
    %842 = vmatpush1.bf16.msra.mxu0 %v613
    %843 = vmatprep.subr.bf16.mxu0 0
    %844 = vmatpush1.bf16.msra.mxu0 %v614
    %845 = vmatprep.subr.bf16.mxu0 0
    %846 = vmatpush1.bf16.msra.mxu0 %v615
    %847 = vmatprep.subr.bf16.mxu0 0
    %848 = vmatpush1.bf16.msra.mxu0 %v616
    %849 = vmatprep.mubr.bf16.mxu0 %v241
    %850 = vmatmul.mubr.bf16.gmra.mrb[0].mxu0 %v239
    %v851 = vpop.f32.mrb[0].mxu0
    %v852 = vadd.f32 %v812, %v851
    %v853 = vpop.f32.mrb[0].mxu0
    %v854 = vpop.f32.mrb[0].mxu0
    %v855 = vpop.f32.mrb[0].mxu0
    %856 = vdwg.mxu0
    %857 = vmatprep.subr.bf16.mxu0 0
    %858 = vmatpush1.bf16.msra.mxu0 %v617
    %859 = vmatprep.subr.bf16.mxu0 0
    %860 = vmatpush1.bf16.msra.mxu0 %v618
    %861 = vmatprep.subr.bf16.mxu0 0
    %862 = vmatpush1.bf16.msra.mxu0 %v619
    %863 = vmatprep.subr.bf16.mxu0 0
    %864 = vmatpush1.bf16.msra.mxu0 %v620
    %865 = vmatprep.subr.bf16.mxu0 0
    %866 = vmatpush1.bf16.msra.mxu0 %v621
    %867 = vmatprep.subr.bf16.mxu0 0
    %868 = vmatpush1.bf16.msra.mxu0 %v622
    %869 = vmatprep.subr.bf16.mxu0 0
    %870 = vmatpush1.bf16.msra.mxu0 %v623
    %871 = vmatprep.subr.bf16.mxu0 0
    %872 = vmatpush1.bf16.msra.mxu0 %v624
    %873 = vmatprep.subr.bf16.mxu0 0
    %874 = vmatpush1.bf16.msra.mxu0 0
    %875 = vmatprep.subr.bf16.mxu0 0
    %876 = vmatpush1.bf16.msra.mxu0 0
    %877 = vmatprep.subr.bf16.mxu0 0
    %878 = vmatpush1.bf16.msra.mxu0 0
    %879 = vmatprep.subr.bf16.mxu0 0
    %880 = vmatpush1.bf16.msra.mxu0 0
    %881 = vmatprep.subr.bf16.mxu0 0
    %882 = vmatpush1.bf16.msra.mxu0 0
    %883 = vmatprep.subr.bf16.mxu0 0
    %884 = vmatpush1.bf16.msra.mxu0 0
    %885 = vmatprep.subr.bf16.mxu0 0
    %886 = vmatpush1.bf16.msra.mxu0 0
    %887 = vmatprep.subr.bf16.mxu0 0
    %888 = vmatpush1.bf16.msra.mxu0 0
    %889 = vmatprep.mubr.bf16.mxu0 0
    %890 = vmatmul.mubr.bf16.gmra.mrb[0].mxu0 %v255
    %v891 = vpop.f32.mrb[0].mxu0
    %v892 = vadd.f32 %v852, %v891
    %v893 = vpop.f32.mrb[0].mxu0
    %v894 = vpop.f32.mrb[0].mxu0
    %v895 = vpop.f32.mrb[0].mxu0
    %896 = vdwg.mxu0
    %vm897 = vcmp.ge.f32.partialorder %v892, 0.0
    %v898 = vmul.f32 %v892, 0.01
    %v899 = vsel %vm897, %v892, %v898
    %v900 = vpack.c.bf16 %v899, %v899
    %v901 = vld [vmem:[%s3] sm:$0xff]
    %v902 = vld [vmem:[%s3 + $0x8] sm:$0xff]
    %v903 = vld [vmem:[%s3 + $0x10] sm:$0xff]
    %v904 = vld [vmem:[%s3 + $0x18] sm:$0xff]
    %v905 = vld [vmem:[%s3 + $0x20] sm:$0xff]
    %v906 = vld [vmem:[%s3 + $0x28] sm:$0xff]
    %v907 = vld [vmem:[%s3 + $0x30] sm:$0xff]
    %v908 = vld [vmem:[%s3 + $0x38] sm:$0xff]
    %v909 = vld [vmem:[%s4] sm:$0x3]
    %v911 = vlaneseq
    %v912 = vshrl.u32 %v911, 7
    %v913 = vsub.s32 0, %v912
    %v914 = vrot.slane %v909, %v913
    %v915 = vlaneseq
    %v916 = vshrl.u32 %v915, 7
    %v917 = vsub.s32 1, %v916
    %v918 = vrot.slane %v909, %v917
    %v929 = vunpack.c.l.b16 %v901
    %v930 = vunpack.c.h.b16 %v901
    %v931 = vunpack.c.l.b16 %v902
    %v932 = vunpack.c.h.b16 %v902
    %v933 = vunpack.c.l.b16 %v903
    %v934 = vunpack.c.h.b16 %v903
    %v935 = vunpack.c.l.b16 %v904
    %v936 = vunpack.c.h.b16 %v904
    %v937 = vunpack.c.l.b16 %v905
    %v938 = vunpack.c.h.b16 %v905
    %v939 = vunpack.c.l.b16 %v906
    %v940 = vunpack.c.h.b16 %v906
    %v941 = vunpack.c.l.b16 %v907
    %v942 = vunpack.c.h.b16 %v907
    %v943 = vunpack.c.l.b16 %v908
    %v944 = vunpack.c.h.b16 %v908
    %v945 = vpack.c.b16 %v931, %v929
    %v946 = vpack.c.b16 %v932, %v930
    %v947 = vpack.c.b16 %v935, %v933
    %v948 = vpack.c.b16 %v936, %v934
    %v949 = vpack.c.b16 %v939, %v937
    %v950 = vpack.c.b16 %v940, %v938
    %v951 = vpack.c.b16 %v943, %v941
    %v952 = vpack.c.b16 %v944, %v942
    %vm961 = vcmask 523264
    %v963 = vsel %vm961, %v900, 0
    %965 = vmatprep.subr.bf16.mxu0 %v946
    %966 = vmatpush1.bf16.msra.mxu0 %v945
    %967 = vmatprep.subr.bf16.mxu0 %v948
    %968 = vmatpush1.bf16.msra.mxu0 %v947
    %969 = vmatprep.subr.bf16.mxu0 %v950
    %970 = vmatpush1.bf16.msra.mxu0 %v949
    %971 = vmatprep.subr.bf16.mxu0 %v952
    %972 = vmatpush1.bf16.msra.mxu0 %v951
    %973 = vmatprep.subr.bf16.mxu0 0
    %974 = vmatpush1.bf16.msra.mxu0 0
    %975 = vmatprep.subr.bf16.mxu0 0
    %976 = vmatpush1.bf16.msra.mxu0 0
    %977 = vmatprep.subr.bf16.mxu0 0
    %978 = vmatpush1.bf16.msra.mxu0 0
    %979 = vmatprep.subr.bf16.mxu0 0
    %980 = vmatpush1.bf16.msra.mxu0 0
    %981 = vmatprep.subr.bf16.mxu0 0
    %982 = vmatpush1.bf16.msra.mxu0 0
    %983 = vmatprep.subr.bf16.mxu0 0
    %984 = vmatpush1.bf16.msra.mxu0 0
    %985 = vmatprep.subr.bf16.mxu0 0
    %986 = vmatpush1.bf16.msra.mxu0 0
    %987 = vmatprep.subr.bf16.mxu0 0
    %988 = vmatpush1.bf16.msra.mxu0 0
    %989 = vmatprep.subr.bf16.mxu0 0
    %990 = vmatpush1.bf16.msra.mxu0 0
    %991 = vmatprep.subr.bf16.mxu0 0
    %992 = vmatpush1.bf16.msra.mxu0 0
    %993 = vmatprep.subr.bf16.mxu0 0
    %994 = vmatpush1.bf16.msra.mxu0 0
    %995 = vmatprep.subr.bf16.mxu0 0
    %996 = vmatpush1.bf16.msra.mxu0 0
    %997 = vmatprep.mubr.bf16.mxu0 0
    %998 = vmatmul.mubr.bf16.gmra.mrb[0].mxu0 %v963
    %v999 = vpop.f32.mrb[0].mxu0
    %v1000 = vadd.f32 %v914, %v999
    %v1001 = vpop.f32.mrb[0].mxu0
    %v1002 = vadd.f32 %v918, %v1001
    %v1003 = vpop.f32.mrb[0].mxu0
    %v1004 = vpop.f32.mrb[0].mxu0
    %1005 = vdwg.mxu0
    %vm1006 = vcmp.ge.f32.partialorder %v1000, 0.0
    %vm1007 = vcmp.ge.f32.partialorder %v1002, 0.0
    %v1008 = vmul.f32 %v1000, 0.01
    %v1009 = vmul.f32 %v1002, 0.01
    %v1010 = vsel %vm1006, %v1000, %v1008
    %v1011 = vsel %vm1007, %v1002, %v1009
    %1012 = vst [vmem:[#allocation3] sm:$0x3] %v1010
    %v1013 = vpack.c.bf16 %v1011, %v1011
    %v1014 = vld [vmem:[%s5] sm:$0xf]
    %v1015 = vld [vmem:[%s5 + $0x4] sm:$0xf]
    %v1016 = vld [vmem:[%s5 + $0x8] sm:$0xf]
    %v1017 = vld [vmem:[%s5 + $0xc] sm:$0xf]
    %v1018 = vld [vmem:[%s5 + $0x10] sm:$0xf]
    %v1019 = vld [vmem:[%s5 + $0x14] sm:$0xf]
    %v1020 = vld [vmem:[%s5 + $0x18] sm:$0xf]
    %v1021 = vld [vmem:[%s5 + $0x1c] sm:$0xf]
    %v1022 = vld [vmem:[%s5 + $0x20] sm:$0xf]
    %v1023 = vld [vmem:[%s5 + $0x24] sm:$0xf]
    %v1024 = vld [vmem:[%s5 + $0x28] sm:$0xf]
    %v1025 = vld [vmem:[%s5 + $0x2c] sm:$0xf]
    %v1026 = vld [vmem:[%s5 + $0x30] sm:$0xf]
    %v1027 = vld [vmem:[%s5 + $0x34] sm:$0xf]
    %v1028 = vld [vmem:[%s5 + $0x38] sm:$0xf]
    %v1029 = vld [vmem:[%s5 + $0x3c] sm:$0xf]
    %v1030 = vld [vmem:[%s6] sm:$0x1]
    %v1032 = vlaneseq
    %v1033 = vshrl.u32 %v1032, 7
    %v1034 = vsub.s32 0, %v1033
    %v1035 = vrot.slane %v1030, %v1034
    %v1053 = vunpack.c.l.b16 %v1014
    %v1054 = vunpack.c.l.b16 %v1015
    %v1055 = vunpack.c.l.b16 %v1016
    %v1056 = vunpack.c.l.b16 %v1017
    %v1057 = vunpack.c.l.b16 %v1018
    %v1058 = vunpack.c.l.b16 %v1019
    %v1059 = vunpack.c.l.b16 %v1020
    %v1060 = vunpack.c.l.b16 %v1021
    %v1061 = vunpack.c.l.b16 %v1022
    %v1062 = vunpack.c.l.b16 %v1023
    %v1063 = vunpack.c.l.b16 %v1024
    %v1064 = vunpack.c.l.b16 %v1025
    %v1065 = vunpack.c.l.b16 %v1026
    %v1066 = vunpack.c.l.b16 %v1027
    %v1067 = vunpack.c.l.b16 %v1028
    %v1068 = vunpack.c.l.b16 %v1029
    %v1069 = vpack.c.b16 %v1054, %v1053
    %v1070 = vpack.c.b16 %v1056, %v1055
    %v1071 = vpack.c.b16 %v1058, %v1057
    %v1072 = vpack.c.b16 %v1060, %v1059
    %v1073 = vpack.c.b16 %v1062, %v1061
    %v1074 = vpack.c.b16 %v1064, %v1063
    %v1075 = vpack.c.b16 %v1066, %v1065
    %v1076 = vpack.c.b16 %v1068, %v1067
    %1085 = vmatprep.subr.bf16.mxu0 0
    %1086 = vmatpush1.bf16.msra.mxu0 %v1069
    %1087 = vmatprep.subr.bf16.mxu0 0
    %1088 = vmatpush1.bf16.msra.mxu0 %v1070
    %1089 = vmatprep.subr.bf16.mxu0 0
    %1090 = vmatpush1.bf16.msra.mxu0 %v1071
    %1091 = vmatprep.subr.bf16.mxu0 0
    %1092 = vmatpush1.bf16.msra.mxu0 %v1072
    %1093 = vmatprep.subr.bf16.mxu0 0
    %1094 = vmatpush1.bf16.msra.mxu0 %v1073
    %1095 = vmatprep.subr.bf16.mxu0 0
    %1096 = vmatpush1.bf16.msra.mxu0 %v1074
    %1097 = vmatprep.subr.bf16.mxu0 0
    %1098 = vmatpush1.bf16.msra.mxu0 %v1075
    %1099 = vmatprep.subr.bf16.mxu0 0
    %1100 = vmatpush1.bf16.msra.mxu0 %v1076
    %1101 = vmatprep.subr.bf16.mxu0 0
    %1102 = vmatpush1.bf16.msra.mxu0 0
    %1103 = vmatprep.subr.bf16.mxu0 0
    %1104 = vmatpush1.bf16.msra.mxu0 0
    %1105 = vmatprep.subr.bf16.mxu0 0
    %1106 = vmatpush1.bf16.msra.mxu0 0
    %1107 = vmatprep.subr.bf16.mxu0 0
    %1108 = vmatpush1.bf16.msra.mxu0 0
    %1109 = vmatprep.subr.bf16.mxu0 0
    %1110 = vmatpush1.bf16.msra.mxu0 0
    %1111 = vmatprep.subr.bf16.mxu0 0
    %1112 = vmatpush1.bf16.msra.mxu0 0
    %1113 = vmatprep.subr.bf16.mxu0 0
    %1114 = vmatpush1.bf16.msra.mxu0 0
    %1115 = vmatprep.subr.bf16.mxu0 0
    %1116 = vmatpush1.bf16.msra.mxu0 0
    %1117 = vmatprep.mubr.bf16.mxu0 0
    %1118 = vmatmul.mubr.bf16.gmra.mrb[0].mxu0 %v1013
    %v1119 = vpop.f32.mrb[0].mxu0
    %v1120 = vadd.f32 %v1035, %v1119
    %v1121 = vpop.f32.mrb[0].mxu0
    %v1122 = vpop.f32.mrb[0].mxu0
    %v1123 = vpop.f32.mrb[0].mxu0
    %1124 = vdwg.mxu0
    %v1125 = vld [vmem:[%s7] sm:$0x1]
    %v1127 = vlaneseq
    %v1128 = vshrl.u32 %v1127, 7
    %v1129 = vsub.s32 0, %v1128
    %v1130 = vrot.slane %v1125, %v1129
    %v1132 = vmul.f32 %v1120, %v1130
    %vm1133 = vcmask 1041408
    %v1134 = vsel %vm1133, %v1132, 0.0
    %1135 = vadd.xlane.f32.xlu0 %v1134
    %v1136 = vpop.xlane.xlu0 %1135
    %v1137 = vld [vmem:[#allocation2] sm:$0x1]
    %v1139 = vlaneseq
    %v1140 = vshrl.u32 %v1139, 7
    %v1141 = vsub.s32 0, %v1140
    %v1142 = vrot.slane %v1137, %v1141
    %v1144 = vadd.f32 %v1136, %v1142
    %vm1145 = vcmask 1024
    %1146 = vst.msk [vmem:[%s10] sm:$0x3] %vm1145, %v1144
    // Predicated region
    $region38: #{cnn_base_forward.5} parent=1 // pred_check
      _
    $region39: #{cnn_base_forward.5} parent=1 // pred_check_branch
      %1148 = sbr.rel (0) target = $region41
    $region40: #{cnn_base_forward.5} parent=1 // pred_region
      %s1150 = ssub.s32 32, 32
      %1151 = vsyncadd [#allocation4], %s1150
      %s1153 = sshll.u32 [#allocation3], 4
      %s1154 = int_to_ptr.vmem [resolvable:$true] %s1153
      %1156 = dma.vmem_to_hbm [thread:$0]  %s1154, 32, %s9, [#allocation4]
    $region41: #{cnn_base_forward.5} parent=1 // pred_fallthru
      _
    // Predicated region
    $region42: #{cnn_base_forward.5} parent=1 // pred_check
      _
    $region43: #{cnn_base_forward.5} parent=1 // pred_check_branch
      %1158 = sbr.rel (0) target = $region45
    $region44: #{cnn_base_forward.5} parent=1 // pred_region
      _
    $region45: #{cnn_base_forward.5} parent=1 // pred_fallthru
      _
    // Predicated region
    $region46: #{cnn_base_forward.5} parent=1 // pred_check
      _
    $region47: #{cnn_base_forward.5} parent=1 // pred_check_branch
      %1160 = sbr.rel (0) target = $region49
    $region48: #{cnn_base_forward.5} parent=1 // pred_region
      %1161 = dma.done [#allocation4], 32
    $region49: #{cnn_base_forward.5} parent=1 // pred_fallthru
      _
    // Predicated region
    $region50: #{cnn_base_forward.5} parent=1 // pred_check
      _
    $region51: #{cnn_base_forward.5} parent=1 // pred_check_branch
      %1163 = sbr.rel (0) target = $region53
    $region52: #{cnn_base_forward.5} parent=1 // pred_region
      _
    $region53: #{cnn_base_forward.5} parent=1 // pred_fallthru
      _
    %1164 = vsyncpa [#allocation4], 1

</llo_original>
